<compile_context>
chip_gen: v7x
topology: tpu7x:2x2x1
jax: 0.10.0
libtpu: 0.0.40
codegen_flags: <defaults>
</compile_context>

<pallas_src>
import math

import jax
import jax.numpy as jnp
from jax.experimental import pallas as pl
from jax.experimental.pallas import tpu as pltpu


# ----------------------------- in-kernel helpers -----------------------------

def _layernorm(x, gamma, eps=1e-5):
    # F.layer_norm over last dim, weight=gamma, bias=None (if_bias=False), f32 math.
    mean = jnp.mean(x, axis=-1, keepdims=True)
    var = jnp.mean((x - mean) ** 2, axis=-1, keepdims=True)
    return (x - mean) * jax.lax.rsqrt(var + eps) * gamma


def _new_gelu(x):
    c = math.sqrt(2.0 / math.pi)
    return 0.5 * x * (1.0 + jnp.tanh(c * (x + 0.044715 * x ** 3)))


# ----------------------------- transformer block -----------------------------

def block_kernel(x_ref, mask_ref, gamma_ref, wq_ref, wk_ref, wv_ref, wproj_ref,
                 wfc1_ref, wfc2_ref, o_ref):
    n_head, _, d_head = wq_ref.shape
    x = x_ref[...].astype(jnp.float32)          # (N, C), N = B*T
    gamma = gamma_ref[...]                      # (1, C) f32, broadcasts over rows
    mask = mask_ref[...]                        # (N, N) additive f32 (causal + batch-block)

    # ---- attention sublayer: x + proj(attn(ln(x))) ----
    h = _layernorm(x, gamma).astype(jnp.bfloat16)

    # per-head projections into a head-major (H, N, D) layout (no lane slicing)
    q = jnp.stack([jnp.dot(h, wq_ref[i], preferred_element_type=jnp.float32)
                   for i in range(n_head)], axis=0)          # (H, N, D) f32
    k = jnp.stack([jnp.dot(h, wk_ref[i], preferred_element_type=jnp.float32)
                   for i in range(n_head)], axis=0)
    v = jnp.stack([jnp.dot(h, wv_ref[i], preferred_element_type=jnp.float32)
                   for i in range(n_head)], axis=0)

    scale = 1.0 / math.sqrt(d_head)
    att = jnp.einsum('hnd,hmd->hnm',
                     q.astype(jnp.bfloat16), k.astype(jnp.bfloat16),
                     preferred_element_type=jnp.float32) * scale      # (H, N, N) f32
    att = att + mask[None, :, :]

    # softmax in f32; denominator reciprocal on the EUP
    att = att - jnp.max(att, axis=-1, keepdims=True)
    p = jnp.exp(att)
    p = p * pl.reciprocal(jnp.sum(p, axis=-1, keepdims=True), approx=True)

    ctx = jnp.einsum('hnm,hmd->hnd',
                     p.astype(jnp.bfloat16), v.astype(jnp.bfloat16),
                     preferred_element_type=jnp.float32)              # (H, N, D) f32

    # output projection: accumulate per-head partial products (D -> C), plus residual
    x2 = x
    for i in range(n_head):
        x2 = x2 + jnp.dot(ctx[i].astype(jnp.bfloat16), wproj_ref[i],
                          preferred_element_type=jnp.float32)

    # ---- feedforward sublayer: x2 + fc2(new_gelu(fc1(ln(x2)))) ----
    # NOTE: the reference Block reuses a SINGLE LayerNorm instance for both sublayers.
    h2 = _layernorm(x2, gamma).astype(jnp.bfloat16)
    f = jnp.dot(h2, wfc1_ref[...], preferred_element_type=jnp.float32)
    f = _new_gelu(f)                                                  # f32 VPU/EUP math
    f = jnp.dot(f.astype(jnp.bfloat16), wfc2_ref[...], preferred_element_type=jnp.float32)

    o_ref[...] = (x2 + f).astype(o_ref.dtype)


def transformer_block(x2d, mask, gamma, wq, wk, wv, wproj, wfc1, wfc2):
    N, C = x2d.shape
    return pl.pallas_call(
        block_kernel,
        out_shape=jax.ShapeDtypeStruct((N, C), x2d.dtype),
        compiler_params=pltpu.CompilerParams(vmem_limit_bytes=48 * 1024 * 1024),
    )(x2d, mask, gamma, wq, wk, wv, wproj, wfc1, wfc2)


# --------------------------- final LN + LM head -------------------------------

def head_kernel(x_ref, gamma_ref, wte_ref, o_ref):
    x = x_ref[...].astype(jnp.float32)                         # (B, C) last-token acts
    h = _layernorm(x, gamma_ref[...]).astype(wte_ref.dtype)
    # logits = h @ wte^T (weight tying) without materializing the transpose
    logits = jax.lax.dot_general(
        h, wte_ref[...],
        dimension_numbers=(((1,), (1,)), ((), ())),
        preferred_element_type=jnp.float32)                    # (B, tv)
    o_ref[...] = logits.astype(o_ref.dtype)


def gpt_head(x_last, gamma_f, wte, *, tv_max=2048):
    B, C = x_last.shape
    V = wte.shape[0]
    tv = V if V <= tv_max else tv_max
    assert V % tv == 0, "vocab size must be divisible by the vocab tile"
    return pl.pallas_call(
        head_kernel,
        out_shape=jax.ShapeDtypeStruct((B, V), jnp.float32),
        grid=(V // tv,),
        in_specs=[
            pl.BlockSpec((B, C), lambda j: (0, 0)),
            pl.BlockSpec((1, C), lambda j: (0, 0)),
            pl.BlockSpec((tv, C), lambda j: (j, 0)),
        ],
        out_specs=pl.BlockSpec((B, tv), lambda j: (0, j)),
        compiler_params=pltpu.CompilerParams(
            dimension_semantics=("parallel",),
            vmem_limit_bytes=48 * 1024 * 1024),
    )(x_last, gamma_f, wte)


# ------------------------------- full GPT forward -----------------------------

def make_attn_mask(B, T):
    """(B*T, B*T) additive mask: 0 within-batch causal, large-negative otherwise."""
    n = B * T
    b_id = jnp.arange(n) // T
    t_id = jnp.arange(n) % T
    allowed = (b_id[:, None] == b_id[None, :]) & (t_id[None, :] <= t_id[:, None])
    return jnp.where(allowed, 0.0, -1e30).astype(jnp.float32)


def gpt_forward(tokens, params):
    """(n_batch, n_seq) int32 -> (n_batch, 1, n_vocabsize) logits (target=None path)."""
    B, T = tokens.shape
    wte = params["wte"]                                   # (V, C) bf16 (tied with l_out)
    wpe = params["wpe"]                                   # (blocksize, C) bf16
    C = wte.shape[1]
    assert T <= wpe.shape[0]

    tok = jnp.take(wte, tokens, axis=0).astype(jnp.float32)      # (B, T, C)
    pos = wpe[:T].astype(jnp.float32)[None, :, :]                # (1, T, C)
    x = (tok + pos).astype(jnp.bfloat16).reshape(B * T, C)       # dropout = identity

    mask = make_attn_mask(B, T)                                  # hoisted once for all layers

    for layer in params["blocks"]:
        x = transformer_block(x, mask, layer["ln_gamma"],
                              layer["w_q"], layer["w_k"], layer["w_v"],
                              layer["w_proj"], layer["w_fc1"], layer["w_fc2"])

    x_last = x.reshape(B, T, C)[:, -1, :]                        # (B, C)
    logits = gpt_head(x_last, params["ln_f_gamma"], wte)         # (B, V) f32
    return logits[:, None, :]                                    # (B, 1, V)


# ------------------------------- param init -----------------------------------

def init_params(key, *, n_layers, n_embd, n_head, n_blocksize, n_vocabsize,
                dtype=jnp.bfloat16):
    std = 0.02
    C, H = n_embd, n_head
    assert C % H == 0
    D = C // H
    keys = jax.random.split(key, 2 + 4 * n_layers)
    params = {
        # wte.weight = l_out.weight (tied); init ~ N(0, 0.02)
        "wte": (std * jax.random.normal(keys[0], (n_vocabsize, C), jnp.float32)).astype(dtype),
        "wpe": (std * jax.random.normal(keys[1], (n_blocksize, C), jnp.float32)).astype(dtype),
        # LayerNorm weight is ones, bias is None (if_bias=False)
        "ln_f_gamma": jnp.ones((1, C), jnp.float32),
        "blocks": [],
    }
    for l in range(n_layers):
        k0, k1, k2, k3 = keys[2 + 4 * l: 2 + 4 * (l + 1)]
        # attention_qkv.weight.T laid out as (C_in, 3C_out), then split per head (H, C, D)
        wqkv = std * jax.random.normal(k0, (C, 3 * C), jnp.float32)
        wq = wqkv[:, 0 * C:1 * C].reshape(C, H, D).transpose(1, 0, 2)
        wk = wqkv[:, 1 * C:2 * C].reshape(C, H, D).transpose(1, 0, 2)
        wv = wqkv[:, 2 * C:3 * C].reshape(C, H, D).transpose(1, 0, 2)
        # proj.weight.T laid out as (C_in, C_out), split per-head rows -> (H, D, C)
        wproj = (std * jax.random.normal(k1, (C, C), jnp.float32)).reshape(H, D, C)
        params["blocks"].append({
            "ln_gamma": jnp.ones((1, C), jnp.float32),
            "w_q": wq.astype(dtype),
            "w_k": wk.astype(dtype),
            "w_v": wv.astype(dtype),
            "w_proj": wproj.astype(dtype),
            "w_fc1": (std * jax.random.normal(k2, (C, 4 * C), jnp.float32)).astype(dtype),
            "w_fc2": (std * jax.random.normal(k3, (4 * C, C), jnp.float32)).astype(dtype),
        })
    return params


# ----------------------------------- main --------------------------------------

if __name__ == "__main__":
    # GPTConfig: n_head=4, n_embd=32, n_blocksize=16, n_vocabsize=64,
    #            n_layers=2, dropout_rate=0.0, if_bias=False, if_flash=False
    n_head, n_embd, n_blocksize, n_vocabsize, n_layers = 4, 32, 16, 64, 2

    key = jax.random.PRNGKey(0)
    pkey, tkey = jax.random.split(key)
    params = init_params(pkey, n_layers=n_layers, n_embd=n_embd, n_head=n_head,
                         n_blocksize=n_blocksize, n_vocabsize=n_vocabsize)

    B, T = 2, 8
    tokens = jax.random.randint(tkey, (B, T), 0, n_vocabsize, dtype=jnp.int32)

    logits = gpt_forward(tokens, params)
    logits = jax.block_until_ready(logits)

    assert logits.shape == (B, 1, n_vocabsize), logits.shape
    assert logits.dtype == jnp.float32
    # TODO(synk): dropout is identity (inference) and the target!=None loss /
    # generate() sampling paths are not implemented as kernels.
    print("KERNEL_OK")
</pallas_src>

<mosaic_0001>
module attributes {stable_mosaic.version = 11 : i64} {
  func.func @block_kernel(%arg0: memref<16x32xbf16, #tpu.memory_space<vmem>>, %arg1: memref<16x16xf32, #tpu.memory_space<vmem>>, %arg2: memref<1x32xf32, #tpu.memory_space<vmem>>, %arg3: memref<4x32x8xbf16, #tpu.memory_space<vmem>>, %arg4: memref<4x32x8xbf16, #tpu.memory_space<vmem>>, %arg5: memref<4x32x8xbf16, #tpu.memory_space<vmem>>, %arg6: memref<4x8x32xbf16, #tpu.memory_space<vmem>>, %arg7: memref<32x128xbf16, #tpu.memory_space<vmem>>, %arg8: memref<128x32xbf16, #tpu.memory_space<vmem>>, %arg9: memref<16x32xbf16, #tpu.memory_space<vmem>>) attributes {dimension_semantics = [], scalar_prefetch = 0 : i64, scratch_operands = 0 : i64, tpu.core_type = #tpu.core_type<tc>} {
    %c0 = arith.constant 0 : index
    %c0_0 = arith.constant 0 : index
    %0 = vector.load %arg0[%c0, %c0_0] : memref<16x32xbf16, #tpu.memory_space<vmem>>, vector<16x32xbf16>
    %1 = arith.extf %0 : vector<16x32xbf16> to vector<16x32xf32>
    %c0_1 = arith.constant 0 : index
    %c0_2 = arith.constant 0 : index
    %2 = vector.load %arg2[%c0_1, %c0_2] : memref<1x32xf32, #tpu.memory_space<vmem>>, vector<1x32xf32>
    %c0_3 = arith.constant 0 : index
    %c0_4 = arith.constant 0 : index
    %3 = vector.load %arg1[%c0_3, %c0_4] : memref<16x16xf32, #tpu.memory_space<vmem>>, vector<16x16xf32>
    %cst = arith.constant dense<0.000000e+00> : vector<16xf32>
    %4 = vector.multi_reduction <add>, %1, %cst [1] : vector<16x32xf32> to vector<16xf32>
    %5 = vector.shape_cast %4 : vector<16xf32> to vector<16x1xf32>
    %cst_5 = arith.constant 3.200000e+01 : f32
    %6 = vector.broadcast %cst_5 : f32 to vector<16x1xf32>
    %7 = arith.divf %5, %6 : vector<16x1xf32>
    %8 = vector.broadcast %7 : vector<16x1xf32> to vector<16x32xf32>
    %9 = arith.subf %1, %8 : vector<16x32xf32>
    %10 = arith.mulf %9, %9 : vector<16x32xf32>
    %cst_6 = arith.constant dense<0.000000e+00> : vector<16xf32>
    %11 = vector.multi_reduction <add>, %10, %cst_6 [1] : vector<16x32xf32> to vector<16xf32>
    %12 = vector.shape_cast %11 : vector<16xf32> to vector<16x1xf32>
    %cst_7 = arith.constant 3.200000e+01 : f32
    %13 = vector.broadcast %cst_7 : f32 to vector<16x1xf32>
    %14 = arith.divf %12, %13 : vector<16x1xf32>
    %15 = vector.broadcast %7 : vector<16x1xf32> to vector<16x32xf32>
    %16 = arith.subf %1, %15 : vector<16x32xf32>
    %cst_8 = arith.constant 9.99999974E-6 : f32
    %17 = vector.broadcast %cst_8 : f32 to vector<16x1xf32>
    %18 = arith.addf %14, %17 : vector<16x1xf32>
    %19 = math.rsqrt %18 : vector<16x1xf32>
    %20 = vector.broadcast %19 : vector<16x1xf32> to vector<16x32xf32>
    %21 = arith.mulf %16, %20 : vector<16x32xf32>
    %22 = vector.broadcast %2 : vector<1x32xf32> to vector<16x32xf32>
    %23 = arith.mulf %21, %22 : vector<16x32xf32>
    %24 = arith.truncf %23 : vector<16x32xf32> to vector<16x32xbf16>
    %c0_9 = arith.constant 0 : index
    %c0_10 = arith.constant 0 : index
    %c0_11 = arith.constant 0 : index
    %25 = vector.load %arg3[%c0_9, %c0_10, %c0_11] : memref<4x32x8xbf16, #tpu.memory_space<vmem>>, vector<1x32x8xbf16>
    %26 = vector.shape_cast %25 : vector<1x32x8xbf16> to vector<32x8xbf16>
    %cst_12 = arith.constant dense<0.000000e+00> : vector<16x8xf32>
    %27 = tpu.matmul %24, %26, %cst_12 {dimension_numbers = #tpu.dot_dimension_numbers<[1], [0], [0], [1], [0, 0, 1, 1], [], []>} : vector<16x32xbf16>, vector<32x8xbf16>, vector<16x8xf32> -> vector<16x8xf32>
    %c1 = arith.constant 1 : index
    %c0_13 = arith.constant 0 : index
    %c0_14 = arith.constant 0 : index
    %28 = vector.load %arg3[%c1, %c0_13, %c0_14] : memref<4x32x8xbf16, #tpu.memory_space<vmem>>, vector<1x32x8xbf16>
    %29 = vector.shape_cast %28 : vector<1x32x8xbf16> to vector<32x8xbf16>
    %cst_15 = arith.constant dense<0.000000e+00> : vector<16x8xf32>
    %30 = tpu.matmul %24, %29, %cst_15 {dimension_numbers = #tpu.dot_dimension_numbers<[1], [0], [0], [1], [0, 0, 1, 1], [], []>} : vector<16x32xbf16>, vector<32x8xbf16>, vector<16x8xf32> -> vector<16x8xf32>
    %c2 = arith.constant 2 : index
    %c0_16 = arith.constant 0 : index
    %c0_17 = arith.constant 0 : index
    %31 = vector.load %arg3[%c2, %c0_16, %c0_17] : memref<4x32x8xbf16, #tpu.memory_space<vmem>>, vector<1x32x8xbf16>
    %32 = vector.shape_cast %31 : vector<1x32x8xbf16> to vector<32x8xbf16>
    %cst_18 = arith.constant dense<0.000000e+00> : vector<16x8xf32>
    %33 = tpu.matmul %24, %32, %cst_18 {dimension_numbers = #tpu.dot_dimension_numbers<[1], [0], [0], [1], [0, 0, 1, 1], [], []>} : vector<16x32xbf16>, vector<32x8xbf16>, vector<16x8xf32> -> vector<16x8xf32>
    %c3 = arith.constant 3 : index
    %c0_19 = arith.constant 0 : index
    %c0_20 = arith.constant 0 : index
    %34 = vector.load %arg3[%c3, %c0_19, %c0_20] : memref<4x32x8xbf16, #tpu.memory_space<vmem>>, vector<1x32x8xbf16>
    %35 = vector.shape_cast %34 : vector<1x32x8xbf16> to vector<32x8xbf16>
    %cst_21 = arith.constant dense<0.000000e+00> : vector<16x8xf32>
    %36 = tpu.matmul %24, %35, %cst_21 {dimension_numbers = #tpu.dot_dimension_numbers<[1], [0], [0], [1], [0, 0, 1, 1], [], []>} : vector<16x32xbf16>, vector<32x8xbf16>, vector<16x8xf32> -> vector<16x8xf32>
    %37 = vector.shape_cast %27 : vector<16x8xf32> to vector<1x16x8xf32>
    %38 = vector.shape_cast %30 : vector<16x8xf32> to vector<1x16x8xf32>
    %39 = vector.shape_cast %33 : vector<16x8xf32> to vector<1x16x8xf32>
    %40 = vector.shape_cast %36 : vector<16x8xf32> to vector<1x16x8xf32>
    %41 = tpu.concatenate %37, %38, %39, %40 in 0 : vector<1x16x8xf32>, vector<1x16x8xf32>, vector<1x16x8xf32>, vector<1x16x8xf32> -> vector<4x16x8xf32>
    %c0_22 = arith.constant 0 : index
    %c0_23 = arith.constant 0 : index
    %c0_24 = arith.constant 0 : index
    %42 = vector.load %arg4[%c0_22, %c0_23, %c0_24] : memref<4x32x8xbf16, #tpu.memory_space<vmem>>, vector<1x32x8xbf16>
    %43 = vector.shape_cast %42 : vector<1x32x8xbf16> to vector<32x8xbf16>
    %cst_25 = arith.constant dense<0.000000e+00> : vector<16x8xf32>
    %44 = tpu.matmul %24, %43, %cst_25 {dimension_numbers = #tpu.dot_dimension_numbers<[1], [0], [0], [1], [0, 0, 1, 1], [], []>} : vector<16x32xbf16>, vector<32x8xbf16>, vector<16x8xf32> -> vector<16x8xf32>
    %c1_26 = arith.constant 1 : index
    %c0_27 = arith.constant 0 : index
    %c0_28 = arith.constant 0 : index
    %45 = vector.load %arg4[%c1_26, %c0_27, %c0_28] : memref<4x32x8xbf16, #tpu.memory_space<vmem>>, vector<1x32x8xbf16>
    %46 = vector.shape_cast %45 : vector<1x32x8xbf16> to vector<32x8xbf16>
    %cst_29 = arith.constant dense<0.000000e+00> : vector<16x8xf32>
    %47 = tpu.matmul %24, %46, %cst_29 {dimension_numbers = #tpu.dot_dimension_numbers<[1], [0], [0], [1], [0, 0, 1, 1], [], []>} : vector<16x32xbf16>, vector<32x8xbf16>, vector<16x8xf32> -> vector<16x8xf32>
    %c2_30 = arith.constant 2 : index
    %c0_31 = arith.constant 0 : index
    %c0_32 = arith.constant 0 : index
    %48 = vector.load %arg4[%c2_30, %c0_31, %c0_32] : memref<4x32x8xbf16, #tpu.memory_space<vmem>>, vector<1x32x8xbf16>
    %49 = vector.shape_cast %48 : vector<1x32x8xbf16> to vector<32x8xbf16>
    %cst_33 = arith.constant dense<0.000000e+00> : vector<16x8xf32>
    %50 = tpu.matmul %24, %49, %cst_33 {dimension_numbers = #tpu.dot_dimension_numbers<[1], [0], [0], [1], [0, 0, 1, 1], [], []>} : vector<16x32xbf16>, vector<32x8xbf16>, vector<16x8xf32> -> vector<16x8xf32>
    %c3_34 = arith.constant 3 : index
    %c0_35 = arith.constant 0 : index
    %c0_36 = arith.constant 0 : index
    %51 = vector.load %arg4[%c3_34, %c0_35, %c0_36] : memref<4x32x8xbf16, #tpu.memory_space<vmem>>, vector<1x32x8xbf16>
    %52 = vector.shape_cast %51 : vector<1x32x8xbf16> to vector<32x8xbf16>
    %cst_37 = arith.constant dense<0.000000e+00> : vector<16x8xf32>
    %53 = tpu.matmul %24, %52, %cst_37 {dimension_numbers = #tpu.dot_dimension_numbers<[1], [0], [0], [1], [0, 0, 1, 1], [], []>} : vector<16x32xbf16>, vector<32x8xbf16>, vector<16x8xf32> -> vector<16x8xf32>
    %54 = vector.shape_cast %44 : vector<16x8xf32> to vector<1x16x8xf32>
    %55 = vector.shape_cast %47 : vector<16x8xf32> to vector<1x16x8xf32>
    %56 = vector.shape_cast %50 : vector<16x8xf32> to vector<1x16x8xf32>
    %57 = vector.shape_cast %53 : vector<16x8xf32> to vector<1x16x8xf32>
    %58 = tpu.concatenate %54, %55, %56, %57 in 0 : vector<1x16x8xf32>, vector<1x16x8xf32>, vector<1x16x8xf32>, vector<1x16x8xf32> -> vector<4x16x8xf32>
    %c0_38 = arith.constant 0 : index
    %c0_39 = arith.constant 0 : index
    %c0_40 = arith.constant 0 : index
    %59 = vector.load %arg5[%c0_38, %c0_39, %c0_40] : memref<4x32x8xbf16, #tpu.memory_space<vmem>>, vector<1x32x8xbf16>
    %60 = vector.shape_cast %59 : vector<1x32x8xbf16> to vector<32x8xbf16>
    %cst_41 = arith.constant dense<0.000000e+00> : vector<16x8xf32>
    %61 = tpu.matmul %24, %60, %cst_41 {dimension_numbers = #tpu.dot_dimension_numbers<[1], [0], [0], [1], [0, 0, 1, 1], [], []>} : vector<16x32xbf16>, vector<32x8xbf16>, vector<16x8xf32> -> vector<16x8xf32>
    %c1_42 = arith.constant 1 : index
    %c0_43 = arith.constant 0 : index
    %c0_44 = arith.constant 0 : index
    %62 = vector.load %arg5[%c1_42, %c0_43, %c0_44] : memref<4x32x8xbf16, #tpu.memory_space<vmem>>, vector<1x32x8xbf16>
    %63 = vector.shape_cast %62 : vector<1x32x8xbf16> to vector<32x8xbf16>
    %cst_45 = arith.constant dense<0.000000e+00> : vector<16x8xf32>
    %64 = tpu.matmul %24, %63, %cst_45 {dimension_numbers = #tpu.dot_dimension_numbers<[1], [0], [0], [1], [0, 0, 1, 1], [], []>} : vector<16x32xbf16>, vector<32x8xbf16>, vector<16x8xf32> -> vector<16x8xf32>
    %c2_46 = arith.constant 2 : index
    %c0_47 = arith.constant 0 : index
    %c0_48 = arith.constant 0 : index
    %65 = vector.load %arg5[%c2_46, %c0_47, %c0_48] : memref<4x32x8xbf16, #tpu.memory_space<vmem>>, vector<1x32x8xbf16>
    %66 = vector.shape_cast %65 : vector<1x32x8xbf16> to vector<32x8xbf16>
    %cst_49 = arith.constant dense<0.000000e+00> : vector<16x8xf32>
    %67 = tpu.matmul %24, %66, %cst_49 {dimension_numbers = #tpu.dot_dimension_numbers<[1], [0], [0], [1], [0, 0, 1, 1], [], []>} : vector<16x32xbf16>, vector<32x8xbf16>, vector<16x8xf32> -> vector<16x8xf32>
    %c3_50 = arith.constant 3 : index
    %c0_51 = arith.constant 0 : index
    %c0_52 = arith.constant 0 : index
    %68 = vector.load %arg5[%c3_50, %c0_51, %c0_52] : memref<4x32x8xbf16, #tpu.memory_space<vmem>>, vector<1x32x8xbf16>
    %69 = vector.shape_cast %68 : vector<1x32x8xbf16> to vector<32x8xbf16>
    %cst_53 = arith.constant dense<0.000000e+00> : vector<16x8xf32>
    %70 = tpu.matmul %24, %69, %cst_53 {dimension_numbers = #tpu.dot_dimension_numbers<[1], [0], [0], [1], [0, 0, 1, 1], [], []>} : vector<16x32xbf16>, vector<32x8xbf16>, vector<16x8xf32> -> vector<16x8xf32>
    %71 = vector.shape_cast %61 : vector<16x8xf32> to vector<1x16x8xf32>
    %72 = vector.shape_cast %64 : vector<16x8xf32> to vector<1x16x8xf32>
    %73 = vector.shape_cast %67 : vector<16x8xf32> to vector<1x16x8xf32>
    %74 = vector.shape_cast %70 : vector<16x8xf32> to vector<1x16x8xf32>
    %75 = tpu.concatenate %71, %72, %73, %74 in 0 : vector<1x16x8xf32>, vector<1x16x8xf32>, vector<1x16x8xf32>, vector<1x16x8xf32> -> vector<4x16x8xf32>
    %76 = arith.truncf %41 : vector<4x16x8xf32> to vector<4x16x8xbf16>
    %77 = arith.truncf %58 : vector<4x16x8xf32> to vector<4x16x8xbf16>
    "tpu.trace_start"() <{level = 10 : i32, message = "hnd,hmd->hnm"}> : () -> ()
    %cst_54 = arith.constant dense<0.000000e+00> : vector<4x16x16xf32>
    %78 = tpu.matmul %76, %77, %cst_54 {dimension_numbers = #tpu.dot_dimension_numbers<[2], [2], [1], [1], [0, 0, 0, 1, 1, 1], [0], [0]>} : vector<4x16x8xbf16>, vector<4x16x8xbf16>, vector<4x16x16xf32> -> vector<4x16x16xf32>
    "tpu.trace_stop"() : () -> ()
    %cst_55 = arith.constant 0.353553385 : f32
    %79 = vector.broadcast %cst_55 : f32 to vector<4x16x16xf32>
    %80 = arith.mulf %78, %79 : vector<4x16x16xf32>
    %81 = vector.shape_cast %3 : vector<16x16xf32> to vector<1x16x16xf32>
    %82 = vector.broadcast %81 : vector<1x16x16xf32> to vector<4x16x16xf32>
    %83 = arith.addf %80, %82 : vector<4x16x16xf32>
    %cst_56 = arith.constant dense<0xFF800000> : vector<4x16xf32>
    %84 = vector.multi_reduction <maximumf>, %83, %cst_56 [2] : vector<4x16x16xf32> to vector<4x16xf32>
    %85 = vector.shape_cast %84 : vector<4x16xf32> to vector<4x16x1xf32>
    %86 = vector.broadcast %85 : vector<4x16x1xf32> to vector<4x16x16xf32>
    %87 = arith.subf %83, %86 : vector<4x16x16xf32>
    %88 = math.exp %87 : vector<4x16x16xf32>
    %cst_57 = arith.constant dense<0.000000e+00> : vector<4x16xf32>
    %89 = vector.multi_reduction <add>, %88, %cst_57 [2] : vector<4x16x16xf32> to vector<4x16xf32>
    %90 = vector.shape_cast %89 : vector<4x16xf32> to vector<4x16x1xf32>
    %91 = tpu.reciprocal %90 {approx = true} : vector<4x16x1xf32> -> vector<4x16x1xf32>
    %92 = vector.broadcast %91 : vector<4x16x1xf32> to vector<4x16x16xf32>
    %93 = arith.mulf %88, %92 : vector<4x16x16xf32>
    %94 = arith.truncf %93 : vector<4x16x16xf32> to vector<4x16x16xbf16>
    %95 = arith.truncf %75 : vector<4x16x8xf32> to vector<4x16x8xbf16>
    "tpu.trace_start"() <{level = 10 : i32, message = "hnm,hmd->hnd"}> : () -> ()
    %cst_58 = arith.constant dense<0.000000e+00> : vector<4x16x8xf32>
    %96 = tpu.matmul %94, %95, %cst_58 {dimension_numbers = #tpu.dot_dimension_numbers<[2], [1], [1], [2], [0, 0, 0, 1, 1, 2], [0], [0]>} : vector<4x16x16xbf16>, vector<4x16x8xbf16>, vector<4x16x8xf32> -> vector<4x16x8xf32>
    "tpu.trace_stop"() : () -> ()
    %97 = vector.extract_strided_slice %96 {offsets = [0, 0, 0], sizes = [1, 16, 8], strides = [1, 1, 1]} : vector<4x16x8xf32> to vector<1x16x8xf32>
    %98 = vector.shape_cast %97 : vector<1x16x8xf32> to vector<16x8xf32>
    %99 = arith.truncf %98 : vector<16x8xf32> to vector<16x8xbf16>
    %c0_59 = arith.constant 0 : index
    %c0_60 = arith.constant 0 : index
    %c0_61 = arith.constant 0 : index
    %100 = vector.load %arg6[%c0_59, %c0_60, %c0_61] : memref<4x8x32xbf16, #tpu.memory_space<vmem>>, vector<1x8x32xbf16>
    %101 = vector.shape_cast %100 : vector<1x8x32xbf16> to vector<8x32xbf16>
    %cst_62 = arith.constant dense<0.000000e+00> : vector<16x32xf32>
    %102 = tpu.matmul %99, %101, %cst_62 {dimension_numbers = #tpu.dot_dimension_numbers<[1], [0], [0], [1], [0, 0, 1, 1], [], []>} : vector<16x8xbf16>, vector<8x32xbf16>, vector<16x32xf32> -> vector<16x32xf32>
    %103 = arith.addf %1, %102 : vector<16x32xf32>
    %104 = vector.extract_strided_slice %96 {offsets = [1, 0, 0], sizes = [1, 16, 8], strides = [1, 1, 1]} : vector<4x16x8xf32> to vector<1x16x8xf32>
    %105 = vector.shape_cast %104 : vector<1x16x8xf32> to vector<16x8xf32>
    %106 = arith.truncf %105 : vector<16x8xf32> to vector<16x8xbf16>
    %c1_63 = arith.constant 1 : index
    %c0_64 = arith.constant 0 : index
    %c0_65 = arith.constant 0 : index
    %107 = vector.load %arg6[%c1_63, %c0_64, %c0_65] : memref<4x8x32xbf16, #tpu.memory_space<vmem>>, vector<1x8x32xbf16>
    %108 = vector.shape_cast %107 : vector<1x8x32xbf16> to vector<8x32xbf16>
    %cst_66 = arith.constant dense<0.000000e+00> : vector<16x32xf32>
    %109 = tpu.matmul %106, %108, %cst_66 {dimension_numbers = #tpu.dot_dimension_numbers<[1], [0], [0], [1], [0, 0, 1, 1], [], []>} : vector<16x8xbf16>, vector<8x32xbf16>, vector<16x32xf32> -> vector<16x32xf32>
    %110 = arith.addf %103, %109 : vector<16x32xf32>
    %111 = vector.extract_strided_slice %96 {offsets = [2, 0, 0], sizes = [1, 16, 8], strides = [1, 1, 1]} : vector<4x16x8xf32> to vector<1x16x8xf32>
    %112 = vector.shape_cast %111 : vector<1x16x8xf32> to vector<16x8xf32>
    %113 = arith.truncf %112 : vector<16x8xf32> to vector<16x8xbf16>
    %c2_67 = arith.constant 2 : index
    %c0_68 = arith.constant 0 : index
    %c0_69 = arith.constant 0 : index
    %114 = vector.load %arg6[%c2_67, %c0_68, %c0_69] : memref<4x8x32xbf16, #tpu.memory_space<vmem>>, vector<1x8x32xbf16>
    %115 = vector.shape_cast %114 : vector<1x8x32xbf16> to vector<8x32xbf16>
    %cst_70 = arith.constant dense<0.000000e+00> : vector<16x32xf32>
    %116 = tpu.matmul %113, %115, %cst_70 {dimension_numbers = #tpu.dot_dimension_numbers<[1], [0], [0], [1], [0, 0, 1, 1], [], []>} : vector<16x8xbf16>, vector<8x32xbf16>, vector<16x32xf32> -> vector<16x32xf32>
    %117 = arith.addf %110, %116 : vector<16x32xf32>
    %118 = vector.extract_strided_slice %96 {offsets = [3, 0, 0], sizes = [1, 16, 8], strides = [1, 1, 1]} : vector<4x16x8xf32> to vector<1x16x8xf32>
    %119 = vector.shape_cast %118 : vector<1x16x8xf32> to vector<16x8xf32>
    %120 = arith.truncf %119 : vector<16x8xf32> to vector<16x8xbf16>
    %c3_71 = arith.constant 3 : index
    %c0_72 = arith.constant 0 : index
    %c0_73 = arith.constant 0 : index
    %121 = vector.load %arg6[%c3_71, %c0_72, %c0_73] : memref<4x8x32xbf16, #tpu.memory_space<vmem>>, vector<1x8x32xbf16>
    %122 = vector.shape_cast %121 : vector<1x8x32xbf16> to vector<8x32xbf16>
    %cst_74 = arith.constant dense<0.000000e+00> : vector<16x32xf32>
    %123 = tpu.matmul %120, %122, %cst_74 {dimension_numbers = #tpu.dot_dimension_numbers<[1], [0], [0], [1], [0, 0, 1, 1], [], []>} : vector<16x8xbf16>, vector<8x32xbf16>, vector<16x32xf32> -> vector<16x32xf32>
    %124 = arith.addf %117, %123 : vector<16x32xf32>
    %cst_75 = arith.constant dense<0.000000e+00> : vector<16xf32>
    %125 = vector.multi_reduction <add>, %124, %cst_75 [1] : vector<16x32xf32> to vector<16xf32>
    %126 = vector.shape_cast %125 : vector<16xf32> to vector<16x1xf32>
    %cst_76 = arith.constant 3.200000e+01 : f32
    %127 = vector.broadcast %cst_76 : f32 to vector<16x1xf32>
    %128 = arith.divf %126, %127 : vector<16x1xf32>
    %129 = vector.broadcast %128 : vector<16x1xf32> to vector<16x32xf32>
    %130 = arith.subf %124, %129 : vector<16x32xf32>
    %131 = arith.mulf %130, %130 : vector<16x32xf32>
    %cst_77 = arith.constant dense<0.000000e+00> : vector<16xf32>
    %132 = vector.multi_reduction <add>, %131, %cst_77 [1] : vector<16x32xf32> to vector<16xf32>
    %133 = vector.shape_cast %132 : vector<16xf32> to vector<16x1xf32>
    %cst_78 = arith.constant 3.200000e+01 : f32
    %134 = vector.broadcast %cst_78 : f32 to vector<16x1xf32>
    %135 = arith.divf %133, %134 : vector<16x1xf32>
    %136 = vector.broadcast %128 : vector<16x1xf32> to vector<16x32xf32>
    %137 = arith.subf %124, %136 : vector<16x32xf32>
    %cst_79 = arith.constant 9.99999974E-6 : f32
    %138 = vector.broadcast %cst_79 : f32 to vector<16x1xf32>
    %139 = arith.addf %135, %138 : vector<16x1xf32>
    %140 = math.rsqrt %139 : vector<16x1xf32>
    %141 = vector.broadcast %140 : vector<16x1xf32> to vector<16x32xf32>
    %142 = arith.mulf %137, %141 : vector<16x32xf32>
    %143 = vector.broadcast %2 : vector<1x32xf32> to vector<16x32xf32>
    %144 = arith.mulf %142, %143 : vector<16x32xf32>
    %145 = arith.truncf %144 : vector<16x32xf32> to vector<16x32xbf16>
    %c0_80 = arith.constant 0 : index
    %c0_81 = arith.constant 0 : index
    %146 = vector.load %arg7[%c0_80, %c0_81] : memref<32x128xbf16, #tpu.memory_space<vmem>>, vector<32x128xbf16>
    %cst_82 = arith.constant dense<0.000000e+00> : vector<16x128xf32>
    %147 = tpu.matmul %145, %146, %cst_82 {dimension_numbers = #tpu.dot_dimension_numbers<[1], [0], [0], [1], [0, 0, 1, 1], [], []>} : vector<16x32xbf16>, vector<32x128xbf16>, vector<16x128xf32> -> vector<16x128xf32>
    %cst_83 = arith.constant 5.000000e-01 : f32
    %148 = vector.broadcast %cst_83 : f32 to vector<16x128xf32>
    %149 = arith.mulf %148, %147 : vector<16x128xf32>
    %150 = arith.mulf %147, %147 : vector<16x128xf32>
    %151 = arith.mulf %147, %150 : vector<16x128xf32>
    %cst_84 = arith.constant 4.471500e-02 : f32
    %152 = vector.broadcast %cst_84 : f32 to vector<16x128xf32>
    %153 = arith.mulf %152, %151 : vector<16x128xf32>
    %154 = arith.addf %147, %153 : vector<16x128xf32>
    %cst_85 = arith.constant 0.797884583 : f32
    %155 = vector.broadcast %cst_85 : f32 to vector<16x128xf32>
    %156 = arith.mulf %155, %154 : vector<16x128xf32>
    %157 = math.tanh %156 : vector<16x128xf32>
    %cst_86 = arith.constant 1.000000e+00 : f32
    %158 = vector.broadcast %cst_86 : f32 to vector<16x128xf32>
    %159 = arith.addf %158, %157 : vector<16x128xf32>
    %160 = arith.mulf %149, %159 : vector<16x128xf32>
    %161 = arith.truncf %160 : vector<16x128xf32> to vector<16x128xbf16>
    %c0_87 = arith.constant 0 : index
    %c0_88 = arith.constant 0 : index
    %162 = vector.load %arg8[%c0_87, %c0_88] : memref<128x32xbf16, #tpu.memory_space<vmem>>, vector<128x32xbf16>
    %cst_89 = arith.constant dense<0.000000e+00> : vector<16x32xf32>
    %163 = tpu.matmul %161, %162, %cst_89 {dimension_numbers = #tpu.dot_dimension_numbers<[1], [0], [0], [1], [0, 0, 1, 1], [], []>} : vector<16x128xbf16>, vector<128x32xbf16>, vector<16x32xf32> -> vector<16x32xf32>
    %164 = arith.addf %124, %163 : vector<16x32xf32>
    %165 = arith.truncf %164 : vector<16x32xf32> to vector<16x32xbf16>
    %c0_90 = arith.constant 0 : index
    %c0_91 = arith.constant 0 : index
    %166 = vector.load %arg9[%c0_90, %c0_91] : memref<16x32xbf16, #tpu.memory_space<vmem>>, vector<16x32xbf16>
    tpu.vector_store %arg9[%c0_90, %c0_91], %165 {strides = array<i32>} : memref<16x32xbf16, #tpu.memory_space<vmem>>, vector<16x32xbf16>,
    return
  }
}

</mosaic_0001>

<llo_original>
// kernel: tpu_custom_call.1
$region0: #{tpu_custom_call.1}
  #allocation0 [shape = 'u32[]', space=smem, size = 0x4, offset = 0x4, fixed_abs, tag = 'smem constant byte address 0x4 - core index']
  #allocation1 [shape = 'u32[144,128]{1,0:T(1,128)}', space=vmem, size = 0x12000, scoped, tag = 'internal scratch']
  %s0 = inlined_call_operand.vmem [shape: bf16[16,32], index: 0, kind: input, shape index: {}]
  %s1 = inlined_call_operand.vmem [shape: f32[16,16], index: 1, kind: input, shape index: {}]
  %s2 = inlined_call_operand.vmem [shape: f32[1,32], index: 2, kind: input, shape index: {}]
  %s3 = inlined_call_operand.vmem [shape: bf16[4,32,8], index: 3, kind: input, shape index: {}]
  %s4 = inlined_call_operand.vmem [shape: bf16[4,32,8], index: 4, kind: input, shape index: {}]
  %s5 = inlined_call_operand.vmem [shape: bf16[4,32,8], index: 5, kind: input, shape index: {}]
  %s6 = inlined_call_operand.vmem [shape: bf16[4,8,32], index: 6, kind: input, shape index: {}]
  %s7 = inlined_call_operand.vmem [shape: bf16[32,128], index: 7, kind: input, shape index: {}]
  %s8 = inlined_call_operand.vmem [shape: bf16[128,32], index: 8, kind: input, shape index: {}]
  %s9 = inlined_call_operand.hbm [shape: bf16[16,32], index: 9, kind: output, shape index: {}]
  %s10 = sld [smem:[#allocation0]]
  $region46: #{tpu_custom_call.1} parent=0
    _
  %s12 = ssub.s32 1, %s10
  %s13 = scalar_select 0, %s12, %s10
  $region1: #{tpu_custom_call.1} parent=0
    #allocation2 [shape = 'u8[4096]{0}', space=vmem, size = 0x1000, scoped, tag = 'output window, operand 0, single buffered']
    #allocation3 [shape = 's32[1]{0}', space=sflag, size = 0x4, scoped, tag = 'scoped memory for tpu_custom_call.1']
    %14 = vsyncpa [#allocation3], 0
    // Predicated region
    $region2: #{tpu_custom_call.1} parent=1 // pred_check
      _
    $region3: #{tpu_custom_call.1} parent=1 // pred_check_branch
      %16 = sbr.rel (0) target = $region5
    $region4: #{tpu_custom_call.1} parent=1 // pred_region
      _
    $region5: #{tpu_custom_call.1} parent=1 // pred_fallthru
      _
    // Predicated region
    $region6: #{tpu_custom_call.1} parent=1 // pred_check
      _
    $region7: #{tpu_custom_call.1} parent=1 // pred_check_branch
      %18 = sbr.rel (0) target = $region9
    $region8: #{tpu_custom_call.1} parent=1 // pred_region
      _
    $region9: #{tpu_custom_call.1} parent=1 // pred_fallthru
      _
    // Predicated region
    $region10: #{tpu_custom_call.1} parent=1 // pred_check
      _
    $region11: #{tpu_custom_call.1} parent=1 // pred_check_branch
      %20 = sbr.rel (0) target = $region13
    $region12: #{tpu_custom_call.1} parent=1 // pred_region
      _
    $region13: #{tpu_custom_call.1} parent=1 // pred_fallthru
      _
    // Predicated region
    $region14: #{tpu_custom_call.1} parent=1 // pred_check
      _
    $region15: #{tpu_custom_call.1} parent=1 // pred_check_branch
      %22 = sbr.rel (0) target = $region17
    $region16: #{tpu_custom_call.1} parent=1 // pred_region
      _
    $region17: #{tpu_custom_call.1} parent=1 // pred_fallthru
      _
    // Predicated region
    $region18: #{tpu_custom_call.1} parent=1 // pred_check
      _
    $region19: #{tpu_custom_call.1} parent=1 // pred_check_branch
      %24 = sbr.rel (0) target = $region21
    $region20: #{tpu_custom_call.1} parent=1 // pred_region
      _
    $region21: #{tpu_custom_call.1} parent=1 // pred_fallthru
      _
    // Predicated region
    $region22: #{tpu_custom_call.1} parent=1 // pred_check
      _
    $region23: #{tpu_custom_call.1} parent=1 // pred_check_branch
      %26 = sbr.rel (0) target = $region25
    $region24: #{tpu_custom_call.1} parent=1 // pred_region
      _
    $region25: #{tpu_custom_call.1} parent=1 // pred_fallthru
      _
    // Predicated region
    $region26: #{tpu_custom_call.1} parent=1 // pred_check
      _
    $region27: #{tpu_custom_call.1} parent=1 // pred_check_branch
      %28 = sbr.rel (0) target = $region29
    $region28: #{tpu_custom_call.1} parent=1 // pred_region
      _
    $region29: #{tpu_custom_call.1} parent=1 // pred_fallthru
      _
    // Predicated region
    $region30: #{tpu_custom_call.1} parent=1 // pred_check
      _
    $region31: #{tpu_custom_call.1} parent=1 // pred_check_branch
      %30 = sbr.rel (0) target = $region33
    $region32: #{tpu_custom_call.1} parent=1 // pred_region
      _
    $region33: #{tpu_custom_call.1} parent=1 // pred_fallthru
      _
    // Predicated region
    $region34: #{tpu_custom_call.1} parent=1 // pred_check
      _
    $region35: #{tpu_custom_call.1} parent=1 // pred_check_branch
      %32 = sbr.rel (0) target = $region37
    $region36: #{tpu_custom_call.1} parent=1 // pred_region
      _
    $region37: #{tpu_custom_call.1} parent=1 // pred_fallthru
      _
    %v34 = vld [vmem:[%s0] sm:$0xf]
    %v35 = vld [vmem:[%s0 + $0x4] sm:$0xf]
    %v36 = vunpack.c.l.bf16 %v34
    %v37 = vunpack.c.l.bf16 %v35
    %v38 = vld [vmem:[%s2] sm:$0x1]
    %v39 = vld [vmem:[%s1] sm:$0xff]
    %v40 = vld [vmem:[%s1 + $0x8] sm:$0xff]
    %vm41 = vcmask 261120
    %v42 = vsel %vm41, %v36, 0.0
    %43 = vadd.xlane.f32.xlu0 %v42
    %v44 = vpop.xlane.xlu0 %43
    %v45 = vsel %vm41, %v37, 0.0
    %46 = vadd.xlane.f32.xlu0 %v45
    %v47 = vpop.xlane.xlu0 %46
    %v48 = vrcp.pop 32.0
    %v49 = vmul.f32 %v44, %v48
    %v50 = vmul.f32 %v47, %v48
    %v51 = vsub.f32 %v36, %v49
    %v52 = vsub.f32 %v37, %v50
    %v53 = vmul.f32 %v51, %v51
    %v54 = vmul.f32 %v52, %v52
    %v55 = vsel %vm41, %v53, 0.0
    %56 = vadd.xlane.f32.xlu0 %v55
    %v57 = vpop.xlane.xlu0 %56
    %v58 = vsel %vm41, %v54, 0.0
    %59 = vadd.xlane.f32.xlu0 %v58
    %v60 = vpop.xlane.xlu0 %59
    %v61 = vmul.f32 %v57, %v48
    %v62 = vmul.f32 %v60, %v48
    %v63 = vadd.f32 %v61, 1e-05
    %v64 = vadd.f32 %v62, 1e-05
    %v65 = vrsqrt.pop %v63
    %v66 = vrsqrt.pop %v64
    %v67 = vmul.f32 %v51, %v65
    %v68 = vmul.f32 %v52, %v66
    %v70 = vlaneseq
    %v71 = vshrl.u32 %v70, 7
    %v72 = vsub.s32 0, %v71
    %v73 = vrot.slane %v38, %v72
    %v75 = vmul.f32 %v67, %v73
    %v76 = vmul.f32 %v68, %v73
    %v77 = vpack.c.bf16 %v76, %v75
    %v78 = vld [vmem:[%s3] sm:$0xf]
    %v79 = vld [vmem:[%s3 + $0x4] sm:$0xf]
    %v80 = vld [vmem:[%s3 + $0x8] sm:$0xf]
    %v81 = vld [vmem:[%s3 + $0xc] sm:$0xf]
    %v86 = vunpack.c.l.b16 %v78
    %v87 = vunpack.c.l.b16 %v79
    %v88 = vunpack.c.l.b16 %v80
    %v89 = vunpack.c.l.b16 %v81
    %v90 = vpack.c.b16 %v87, %v86
    %v91 = vpack.c.b16 %v89, %v88
    %v95 = vsel %vm41, %v77, 0
    %97 = vmatprep.subr.bf16.mxu0 0
    %98 = vmatpush1.bf16.msra.mxu0 %v90
    %99 = vmatprep.subr.bf16.mxu0 0
    %100 = vmatpush1.bf16.msra.mxu0 %v91
    %101 = vmatprep.subr.bf16.mxu0 0
    %102 = vmatpush1.bf16.msra.mxu0 0
    %103 = vmatprep.subr.bf16.mxu0 0
    %104 = vmatpush1.bf16.msra.mxu0 0
    %105 = vmatprep.subr.bf16.mxu0 0
    %106 = vmatpush1.bf16.msra.mxu0 0
    %107 = vmatprep.subr.bf16.mxu0 0
    %108 = vmatpush1.bf16.msra.mxu0 0
    %109 = vmatprep.subr.bf16.mxu0 0
    %110 = vmatpush1.bf16.msra.mxu0 0
    %111 = vmatprep.subr.bf16.mxu0 0
    %112 = vmatpush1.bf16.msra.mxu0 0
    %113 = vmatprep.subr.bf16.mxu0 0
    %114 = vmatpush1.bf16.msra.mxu0 0
    %115 = vmatprep.subr.bf16.mxu0 0
    %116 = vmatpush1.bf16.msra.mxu0 0
    %117 = vmatprep.subr.bf16.mxu0 0
    %118 = vmatpush1.bf16.msra.mxu0 0
    %119 = vmatprep.subr.bf16.mxu0 0
    %120 = vmatpush1.bf16.msra.mxu0 0
    %121 = vmatprep.subr.bf16.mxu0 0
    %122 = vmatpush1.bf16.msra.mxu0 0
    %123 = vmatprep.subr.bf16.mxu0 0
    %124 = vmatpush1.bf16.msra.mxu0 0
    %125 = vmatprep.subr.bf16.mxu0 0
    %126 = vmatpush1.bf16.msra.mxu0 0
    %127 = vmatprep.subr.bf16.mxu0 0
    %128 = vmatpush1.bf16.msra.mxu0 0
    %129 = vmatprep.mubr.bf16.mxu0 0
    %130 = vmatmul.mubr.bf16.gmra.mrb[0].mxu0 %v95
    %v131 = vpop.f32.mrb[0].mxu0
    %v132 = vadd.f32 0.0, %v131
    %v133 = vpop.f32.mrb[0].mxu0
    %v134 = vpop.f32.mrb[0].mxu0
    %v135 = vadd.f32 0.0, %v134
    %v136 = vpop.f32.mrb[0].mxu0
    %137 = vdwg.mxu0
    %s138 = scalar_lea.vmem %s3, 16
    %v139 = vld [vmem:[%s138] sm:$0xf]
    %v140 = vld [vmem:[%s138 + $0x4] sm:$0xf]
    %v141 = vld [vmem:[%s138 + $0x8] sm:$0xf]
    %v142 = vld [vmem:[%s138 + $0xc] sm:$0xf]
    %v147 = vunpack.c.l.b16 %v139
    %v148 = vunpack.c.l.b16 %v140
    %v149 = vunpack.c.l.b16 %v141
    %v150 = vunpack.c.l.b16 %v142
    %v151 = vpack.c.b16 %v148, %v147
    %v152 = vpack.c.b16 %v150, %v149
    %155 = vmatprep.subr.bf16.mxu0 0
    %156 = vmatpush1.bf16.msra.mxu0 %v151
    %157 = vmatprep.subr.bf16.mxu0 0
    %158 = vmatpush1.bf16.msra.mxu0 %v152
    %159 = vmatprep.subr.bf16.mxu0 0
    %160 = vmatpush1.bf16.msra.mxu0 0
    %161 = vmatprep.subr.bf16.mxu0 0
    %162 = vmatpush1.bf16.msra.mxu0 0
    %163 = vmatprep.subr.bf16.mxu0 0
    %164 = vmatpush1.bf16.msra.mxu0 0
    %165 = vmatprep.subr.bf16.mxu0 0
    %166 = vmatpush1.bf16.msra.mxu0 0
    %167 = vmatprep.subr.bf16.mxu0 0
    %168 = vmatpush1.bf16.msra.mxu0 0
    %169 = vmatprep.subr.bf16.mxu0 0
    %170 = vmatpush1.bf16.msra.mxu0 0
    %171 = vmatprep.subr.bf16.mxu0 0
    %172 = vmatpush1.bf16.msra.mxu0 0
    %173 = vmatprep.subr.bf16.mxu0 0
    %174 = vmatpush1.bf16.msra.mxu0 0
    %175 = vmatprep.subr.bf16.mxu0 0
    %176 = vmatpush1.bf16.msra.mxu0 0
    %177 = vmatprep.subr.bf16.mxu0 0
    %178 = vmatpush1.bf16.msra.mxu0 0
    %179 = vmatprep.subr.bf16.mxu0 0
    %180 = vmatpush1.bf16.msra.mxu0 0
    %181 = vmatprep.subr.bf16.mxu0 0
    %182 = vmatpush1.bf16.msra.mxu0 0
    %183 = vmatprep.subr.bf16.mxu0 0
    %184 = vmatpush1.bf16.msra.mxu0 0
    %185 = vmatprep.subr.bf16.mxu0 0
    %186 = vmatpush1.bf16.msra.mxu0 0
    %187 = vmatprep.mubr.bf16.mxu0 0
    %188 = vmatmul.mubr.bf16.gmra.mrb[0].mxu0 %v95
    %v189 = vpop.f32.mrb[0].mxu0
    %v190 = vadd.f32 0.0, %v189
    %v191 = vpop.f32.mrb[0].mxu0
    %v192 = vpop.f32.mrb[0].mxu0
    %v193 = vadd.f32 0.0, %v192
    %v194 = vpop.f32.mrb[0].mxu0
    %195 = vdwg.mxu0
    %s196 = scalar_lea.vmem %s3, 32
    %v197 = vld [vmem:[%s196] sm:$0xf]
    %v198 = vld [vmem:[%s196 + $0x4] sm:$0xf]
    %v199 = vld [vmem:[%s196 + $0x8] sm:$0xf]
    %v200 = vld [vmem:[%s196 + $0xc] sm:$0xf]
    %v205 = vunpack.c.l.b16 %v197
    %v206 = vunpack.c.l.b16 %v198
    %v207 = vunpack.c.l.b16 %v199
    %v208 = vunpack.c.l.b16 %v200
    %v209 = vpack.c.b16 %v206, %v205
    %v210 = vpack.c.b16 %v208, %v207
    %213 = vmatprep.subr.bf16.mxu0 0
    %214 = vmatpush1.bf16.msra.mxu0 %v209
    %215 = vmatprep.subr.bf16.mxu0 0
    %216 = vmatpush1.bf16.msra.mxu0 %v210
    %217 = vmatprep.subr.bf16.mxu0 0
    %218 = vmatpush1.bf16.msra.mxu0 0
    %219 = vmatprep.subr.bf16.mxu0 0
    %220 = vmatpush1.bf16.msra.mxu0 0
    %221 = vmatprep.subr.bf16.mxu0 0
    %222 = vmatpush1.bf16.msra.mxu0 0
    %223 = vmatprep.subr.bf16.mxu0 0
    %224 = vmatpush1.bf16.msra.mxu0 0
    %225 = vmatprep.subr.bf16.mxu0 0
    %226 = vmatpush1.bf16.msra.mxu0 0
    %227 = vmatprep.subr.bf16.mxu0 0
    %228 = vmatpush1.bf16.msra.mxu0 0
    %229 = vmatprep.subr.bf16.mxu0 0
    %230 = vmatpush1.bf16.msra.mxu0 0
    %231 = vmatprep.subr.bf16.mxu0 0
    %232 = vmatpush1.bf16.msra.mxu0 0
    %233 = vmatprep.subr.bf16.mxu0 0
    %234 = vmatpush1.bf16.msra.mxu0 0
    %235 = vmatprep.subr.bf16.mxu0 0
    %236 = vmatpush1.bf16.msra.mxu0 0
    %237 = vmatprep.subr.bf16.mxu0 0
    %238 = vmatpush1.bf16.msra.mxu0 0
    %239 = vmatprep.subr.bf16.mxu0 0
    %240 = vmatpush1.bf16.msra.mxu0 0
    %241 = vmatprep.subr.bf16.mxu0 0
    %242 = vmatpush1.bf16.msra.mxu0 0
    %243 = vmatprep.subr.bf16.mxu0 0
    %244 = vmatpush1.bf16.msra.mxu0 0
    %245 = vmatprep.mubr.bf16.mxu0 0
    %246 = vmatmul.mubr.bf16.gmra.mrb[0].mxu0 %v95
    %v247 = vpop.f32.mrb[0].mxu0
    %v248 = vadd.f32 0.0, %v247
    %v249 = vpop.f32.mrb[0].mxu0
    %v250 = vpop.f32.mrb[0].mxu0
    %v251 = vadd.f32 0.0, %v250
    %v252 = vpop.f32.mrb[0].mxu0
    %253 = vdwg.mxu0
    %s254 = scalar_lea.vmem %s3, 48
    %v255 = vld [vmem:[%s254] sm:$0xf]
    %v256 = vld [vmem:[%s254 + $0x4] sm:$0xf]
    %v257 = vld [vmem:[%s254 + $0x8] sm:$0xf]
    %v258 = vld [vmem:[%s254 + $0xc] sm:$0xf]
    %v263 = vunpack.c.l.b16 %v255
    %v264 = vunpack.c.l.b16 %v256
    %v265 = vunpack.c.l.b16 %v257
    %v266 = vunpack.c.l.b16 %v258
    %v267 = vpack.c.b16 %v264, %v263
    %v268 = vpack.c.b16 %v266, %v265
    %271 = vmatprep.subr.bf16.mxu0 0
    %272 = vmatpush1.bf16.msra.mxu0 %v267
    %273 = vmatprep.subr.bf16.mxu0 0
    %274 = vmatpush1.bf16.msra.mxu0 %v268
    %275 = vmatprep.subr.bf16.mxu0 0
    %276 = vmatpush1.bf16.msra.mxu0 0
    %277 = vmatprep.subr.bf16.mxu0 0
    %278 = vmatpush1.bf16.msra.mxu0 0
    %279 = vmatprep.subr.bf16.mxu0 0
    %280 = vmatpush1.bf16.msra.mxu0 0
    %281 = vmatprep.subr.bf16.mxu0 0
    %282 = vmatpush1.bf16.msra.mxu0 0
    %283 = vmatprep.subr.bf16.mxu0 0
    %284 = vmatpush1.bf16.msra.mxu0 0
    %285 = vmatprep.subr.bf16.mxu0 0
    %286 = vmatpush1.bf16.msra.mxu0 0
    %287 = vmatprep.subr.bf16.mxu0 0
    %288 = vmatpush1.bf16.msra.mxu0 0
    %289 = vmatprep.subr.bf16.mxu0 0
    %290 = vmatpush1.bf16.msra.mxu0 0
    %291 = vmatprep.subr.bf16.mxu0 0
    %292 = vmatpush1.bf16.msra.mxu0 0
    %293 = vmatprep.subr.bf16.mxu0 0
    %294 = vmatpush1.bf16.msra.mxu0 0
    %295 = vmatprep.subr.bf16.mxu0 0
    %296 = vmatpush1.bf16.msra.mxu0 0
    %297 = vmatprep.subr.bf16.mxu0 0
    %298 = vmatpush1.bf16.msra.mxu0 0
    %299 = vmatprep.subr.bf16.mxu0 0
    %300 = vmatpush1.bf16.msra.mxu0 0
    %301 = vmatprep.subr.bf16.mxu0 0
    %302 = vmatpush1.bf16.msra.mxu0 0
    %303 = vmatprep.mubr.bf16.mxu0 0
    %304 = vmatmul.mubr.bf16.gmra.mrb[0].mxu0 %v95
    %v305 = vpop.f32.mrb[0].mxu0
    %v306 = vadd.f32 0.0, %v305
    %v307 = vpop.f32.mrb[0].mxu0
    %v308 = vpop.f32.mrb[0].mxu0
    %v309 = vadd.f32 0.0, %v308
    %v310 = vpop.f32.mrb[0].mxu0
    %311 = vdwg.mxu0
    %v312 = vld [vmem:[%s4] sm:$0xf]
    %v313 = vld [vmem:[%s4 + $0x4] sm:$0xf]
    %v314 = vld [vmem:[%s4 + $0x8] sm:$0xf]
    %v315 = vld [vmem:[%s4 + $0xc] sm:$0xf]
    %v320 = vunpack.c.l.b16 %v312
    %v321 = vunpack.c.l.b16 %v313
    %v322 = vunpack.c.l.b16 %v314
    %v323 = vunpack.c.l.b16 %v315
    %v324 = vpack.c.b16 %v321, %v320
    %v325 = vpack.c.b16 %v323, %v322
    %328 = vmatprep.subr.bf16.mxu0 0
    %329 = vmatpush1.bf16.msra.mxu0 %v324
    %330 = vmatprep.subr.bf16.mxu0 0
    %331 = vmatpush1.bf16.msra.mxu0 %v325
    %332 = vmatprep.subr.bf16.mxu0 0
    %333 = vmatpush1.bf16.msra.mxu0 0
    %334 = vmatprep.subr.bf16.mxu0 0
    %335 = vmatpush1.bf16.msra.mxu0 0
    %336 = vmatprep.subr.bf16.mxu0 0
    %337 = vmatpush1.bf16.msra.mxu0 0
    %338 = vmatprep.subr.bf16.mxu0 0
    %339 = vmatpush1.bf16.msra.mxu0 0
    %340 = vmatprep.subr.bf16.mxu0 0
    %341 = vmatpush1.bf16.msra.mxu0 0
    %342 = vmatprep.subr.bf16.mxu0 0
    %343 = vmatpush1.bf16.msra.mxu0 0
    %344 = vmatprep.subr.bf16.mxu0 0
    %345 = vmatpush1.bf16.msra.mxu0 0
    %346 = vmatprep.subr.bf16.mxu0 0
    %347 = vmatpush1.bf16.msra.mxu0 0
    %348 = vmatprep.subr.bf16.mxu0 0
    %349 = vmatpush1.bf16.msra.mxu0 0
    %350 = vmatprep.subr.bf16.mxu0 0
    %351 = vmatpush1.bf16.msra.mxu0 0
    %352 = vmatprep.subr.bf16.mxu0 0
    %353 = vmatpush1.bf16.msra.mxu0 0
    %354 = vmatprep.subr.bf16.mxu0 0
    %355 = vmatpush1.bf16.msra.mxu0 0
    %356 = vmatprep.subr.bf16.mxu0 0
    %357 = vmatpush1.bf16.msra.mxu0 0
    %358 = vmatprep.subr.bf16.mxu0 0
    %359 = vmatpush1.bf16.msra.mxu0 0
    %360 = vmatprep.mubr.bf16.mxu0 0
    %361 = vmatmul.mubr.bf16.gmra.mrb[0].mxu0 %v95
    %v362 = vpop.f32.mrb[0].mxu0
    %v363 = vadd.f32 0.0, %v362
    %v364 = vpop.f32.mrb[0].mxu0
    %v365 = vpop.f32.mrb[0].mxu0
    %v366 = vadd.f32 0.0, %v365
    %v367 = vpop.f32.mrb[0].mxu0
    %368 = vdwg.mxu0
    %s369 = scalar_lea.vmem %s4, 16
    %v370 = vld [vmem:[%s369] sm:$0xf]
    %v371 = vld [vmem:[%s369 + $0x4] sm:$0xf]
    %v372 = vld [vmem:[%s369 + $0x8] sm:$0xf]
    %v373 = vld [vmem:[%s369 + $0xc] sm:$0xf]
    %v378 = vunpack.c.l.b16 %v370
    %v379 = vunpack.c.l.b16 %v371
    %v380 = vunpack.c.l.b16 %v372
    %v381 = vunpack.c.l.b16 %v373
    %v382 = vpack.c.b16 %v379, %v378
    %v383 = vpack.c.b16 %v381, %v380
    %386 = vmatprep.subr.bf16.mxu0 0
    %387 = vmatpush1.bf16.msra.mxu0 %v382
    %388 = vmatprep.subr.bf16.mxu0 0
    %389 = vmatpush1.bf16.msra.mxu0 %v383
    %390 = vmatprep.subr.bf16.mxu0 0
    %391 = vmatpush1.bf16.msra.mxu0 0
    %392 = vmatprep.subr.bf16.mxu0 0
    %393 = vmatpush1.bf16.msra.mxu0 0
    %394 = vmatprep.subr.bf16.mxu0 0
    %395 = vmatpush1.bf16.msra.mxu0 0
    %396 = vmatprep.subr.bf16.mxu0 0
    %397 = vmatpush1.bf16.msra.mxu0 0
    %398 = vmatprep.subr.bf16.mxu0 0
    %399 = vmatpush1.bf16.msra.mxu0 0
    %400 = vmatprep.subr.bf16.mxu0 0
    %401 = vmatpush1.bf16.msra.mxu0 0
    %402 = vmatprep.subr.bf16.mxu0 0
    %403 = vmatpush1.bf16.msra.mxu0 0
    %404 = vmatprep.subr.bf16.mxu0 0
    %405 = vmatpush1.bf16.msra.mxu0 0
    %406 = vmatprep.subr.bf16.mxu0 0
    %407 = vmatpush1.bf16.msra.mxu0 0
    %408 = vmatprep.subr.bf16.mxu0 0
    %409 = vmatpush1.bf16.msra.mxu0 0
    %410 = vmatprep.subr.bf16.mxu0 0
    %411 = vmatpush1.bf16.msra.mxu0 0
    %412 = vmatprep.subr.bf16.mxu0 0
    %413 = vmatpush1.bf16.msra.mxu0 0
    %414 = vmatprep.subr.bf16.mxu0 0
    %415 = vmatpush1.bf16.msra.mxu0 0
    %416 = vmatprep.subr.bf16.mxu0 0
    %417 = vmatpush1.bf16.msra.mxu0 0
    %418 = vmatprep.mubr.bf16.mxu0 0
    %419 = vmatmul.mubr.bf16.gmra.mrb[0].mxu0 %v95
    %v420 = vpop.f32.mrb[0].mxu0
    %v421 = vadd.f32 0.0, %v420
    %v422 = vpop.f32.mrb[0].mxu0
    %v423 = vpop.f32.mrb[0].mxu0
    %v424 = vadd.f32 0.0, %v423
    %v425 = vpop.f32.mrb[0].mxu0
    %426 = vdwg.mxu0
    %s427 = scalar_lea.vmem %s4, 32
    %v428 = vld [vmem:[%s427] sm:$0xf]
    %v429 = vld [vmem:[%s427 + $0x4] sm:$0xf]
    %v430 = vld [vmem:[%s427 + $0x8] sm:$0xf]
    %v431 = vld [vmem:[%s427 + $0xc] sm:$0xf]
    %v436 = vunpack.c.l.b16 %v428
    %v437 = vunpack.c.l.b16 %v429
    %v438 = vunpack.c.l.b16 %v430
    %v439 = vunpack.c.l.b16 %v431
    %v440 = vpack.c.b16 %v437, %v436
    %v441 = vpack.c.b16 %v439, %v438
    %444 = vmatprep.subr.bf16.mxu0 0
    %445 = vmatpush1.bf16.msra.mxu0 %v440
    %446 = vmatprep.subr.bf16.mxu0 0
    %447 = vmatpush1.bf16.msra.mxu0 %v441
    %448 = vmatprep.subr.bf16.mxu0 0
    %449 = vmatpush1.bf16.msra.mxu0 0
    %450 = vmatprep.subr.bf16.mxu0 0
    %451 = vmatpush1.bf16.msra.mxu0 0
    %452 = vmatprep.subr.bf16.mxu0 0
    %453 = vmatpush1.bf16.msra.mxu0 0
    %454 = vmatprep.subr.bf16.mxu0 0
    %455 = vmatpush1.bf16.msra.mxu0 0
    %456 = vmatprep.subr.bf16.mxu0 0
    %457 = vmatpush1.bf16.msra.mxu0 0
    %458 = vmatprep.subr.bf16.mxu0 0
    %459 = vmatpush1.bf16.msra.mxu0 0
    %460 = vmatprep.subr.bf16.mxu0 0
    %461 = vmatpush1.bf16.msra.mxu0 0
    %462 = vmatprep.subr.bf16.mxu0 0
    %463 = vmatpush1.bf16.msra.mxu0 0
    %464 = vmatprep.subr.bf16.mxu0 0
    %465 = vmatpush1.bf16.msra.mxu0 0
    %466 = vmatprep.subr.bf16.mxu0 0
    %467 = vmatpush1.bf16.msra.mxu0 0
    %468 = vmatprep.subr.bf16.mxu0 0
    %469 = vmatpush1.bf16.msra.mxu0 0
    %470 = vmatprep.subr.bf16.mxu0 0
    %471 = vmatpush1.bf16.msra.mxu0 0
    %472 = vmatprep.subr.bf16.mxu0 0
    %473 = vmatpush1.bf16.msra.mxu0 0
    %474 = vmatprep.subr.bf16.mxu0 0
    %475 = vmatpush1.bf16.msra.mxu0 0
    %476 = vmatprep.mubr.bf16.mxu0 0
    %477 = vmatmul.mubr.bf16.gmra.mrb[0].mxu0 %v95
    %v478 = vpop.f32.mrb[0].mxu0
    %v479 = vadd.f32 0.0, %v478
    %v480 = vpop.f32.mrb[0].mxu0
    %v481 = vpop.f32.mrb[0].mxu0
    %v482 = vadd.f32 0.0, %v481
    %v483 = vpop.f32.mrb[0].mxu0
    %484 = vdwg.mxu0
    %s485 = scalar_lea.vmem %s4, 48
    %v486 = vld [vmem:[%s485] sm:$0xf]
    %v487 = vld [vmem:[%s485 + $0x4] sm:$0xf]
    %v488 = vld [vmem:[%s485 + $0x8] sm:$0xf]
    %v489 = vld [vmem:[%s485 + $0xc] sm:$0xf]
    %v494 = vunpack.c.l.b16 %v486
    %v495 = vunpack.c.l.b16 %v487
    %v496 = vunpack.c.l.b16 %v488
    %v497 = vunpack.c.l.b16 %v489
    %v498 = vpack.c.b16 %v495, %v494
    %v499 = vpack.c.b16 %v497, %v496
    %502 = vmatprep.subr.bf16.mxu0 0
    %503 = vmatpush1.bf16.msra.mxu0 %v498
    %504 = vmatprep.subr.bf16.mxu0 0
    %505 = vmatpush1.bf16.msra.mxu0 %v499
    %506 = vmatprep.subr.bf16.mxu0 0
    %507 = vmatpush1.bf16.msra.mxu0 0
    %508 = vmatprep.subr.bf16.mxu0 0
    %509 = vmatpush1.bf16.msra.mxu0 0
    %510 = vmatprep.subr.bf16.mxu0 0
    %511 = vmatpush1.bf16.msra.mxu0 0
    %512 = vmatprep.subr.bf16.mxu0 0
    %513 = vmatpush1.bf16.msra.mxu0 0
    %514 = vmatprep.subr.bf16.mxu0 0
    %515 = vmatpush1.bf16.msra.mxu0 0
    %516 = vmatprep.subr.bf16.mxu0 0
    %517 = vmatpush1.bf16.msra.mxu0 0
    %518 = vmatprep.subr.bf16.mxu0 0
    %519 = vmatpush1.bf16.msra.mxu0 0
    %520 = vmatprep.subr.bf16.mxu0 0
    %521 = vmatpush1.bf16.msra.mxu0 0
    %522 = vmatprep.subr.bf16.mxu0 0
    %523 = vmatpush1.bf16.msra.mxu0 0
    %524 = vmatprep.subr.bf16.mxu0 0
    %525 = vmatpush1.bf16.msra.mxu0 0
    %526 = vmatprep.subr.bf16.mxu0 0
    %527 = vmatpush1.bf16.msra.mxu0 0
    %528 = vmatprep.subr.bf16.mxu0 0
    %529 = vmatpush1.bf16.msra.mxu0 0
    %530 = vmatprep.subr.bf16.mxu0 0
    %531 = vmatpush1.bf16.msra.mxu0 0
    %532 = vmatprep.subr.bf16.mxu0 0
    %533 = vmatpush1.bf16.msra.mxu0 0
    %534 = vmatprep.mubr.bf16.mxu0 0
    %535 = vmatmul.mubr.bf16.gmra.mrb[0].mxu0 %v95
    %v536 = vpop.f32.mrb[0].mxu0
    %v537 = vadd.f32 0.0, %v536
    %v538 = vpop.f32.mrb[0].mxu0
    %v539 = vpop.f32.mrb[0].mxu0
    %v540 = vadd.f32 0.0, %v539
    %v541 = vpop.f32.mrb[0].mxu0
    %542 = vdwg.mxu0
    %v543 = vld [vmem:[%s5] sm:$0xf]
    %v544 = vld [vmem:[%s5 + $0x4] sm:$0xf]
    %v545 = vld [vmem:[%s5 + $0x8] sm:$0xf]
    %v546 = vld [vmem:[%s5 + $0xc] sm:$0xf]
    %v551 = vunpack.c.l.b16 %v543
    %v552 = vunpack.c.l.b16 %v544
    %v553 = vunpack.c.l.b16 %v545
    %v554 = vunpack.c.l.b16 %v546
    %v555 = vpack.c.b16 %v552, %v551
    %v556 = vpack.c.b16 %v554, %v553
    %559 = vmatprep.subr.bf16.mxu0 0
    %560 = vmatpush1.bf16.msra.mxu0 %v555
    %561 = vmatprep.subr.bf16.mxu0 0
    %562 = vmatpush1.bf16.msra.mxu0 %v556
    %563 = vmatprep.subr.bf16.mxu0 0
    %564 = vmatpush1.bf16.msra.mxu0 0
    %565 = vmatprep.subr.bf16.mxu0 0
    %566 = vmatpush1.bf16.msra.mxu0 0
    %567 = vmatprep.subr.bf16.mxu0 0
    %568 = vmatpush1.bf16.msra.mxu0 0
    %569 = vmatprep.subr.bf16.mxu0 0
    %570 = vmatpush1.bf16.msra.mxu0 0
    %571 = vmatprep.subr.bf16.mxu0 0
    %572 = vmatpush1.bf16.msra.mxu0 0
    %573 = vmatprep.subr.bf16.mxu0 0
    %574 = vmatpush1.bf16.msra.mxu0 0
    %575 = vmatprep.subr.bf16.mxu0 0
    %576 = vmatpush1.bf16.msra.mxu0 0
    %577 = vmatprep.subr.bf16.mxu0 0
    %578 = vmatpush1.bf16.msra.mxu0 0
    %579 = vmatprep.subr.bf16.mxu0 0
    %580 = vmatpush1.bf16.msra.mxu0 0
    %581 = vmatprep.subr.bf16.mxu0 0
    %582 = vmatpush1.bf16.msra.mxu0 0
    %583 = vmatprep.subr.bf16.mxu0 0
    %584 = vmatpush1.bf16.msra.mxu0 0
    %585 = vmatprep.subr.bf16.mxu0 0
    %586 = vmatpush1.bf16.msra.mxu0 0
    %587 = vmatprep.subr.bf16.mxu0 0
    %588 = vmatpush1.bf16.msra.mxu0 0
    %589 = vmatprep.subr.bf16.mxu0 0
    %590 = vmatpush1.bf16.msra.mxu0 0
    %591 = vmatprep.mubr.bf16.mxu0 0
    %592 = vmatmul.mubr.bf16.gmra.mrb[0].mxu0 %v95
    %v593 = vpop.f32.mrb[0].mxu0
    %v594 = vadd.f32 0.0, %v593
    %v595 = vpop.f32.mrb[0].mxu0
    %v596 = vpop.f32.mrb[0].mxu0
    %v597 = vadd.f32 0.0, %v596
    %v598 = vpop.f32.mrb[0].mxu0
    %599 = vdwg.mxu0
    %s600 = scalar_lea.vmem %s5, 16
    %v601 = vld [vmem:[%s600] sm:$0xf]
    %v602 = vld [vmem:[%s600 + $0x4] sm:$0xf]
    %v603 = vld [vmem:[%s600 + $0x8] sm:$0xf]
    %v604 = vld [vmem:[%s600 + $0xc] sm:$0xf]
    %v609 = vunpack.c.l.b16 %v601
    %v610 = vunpack.c.l.b16 %v602
    %v611 = vunpack.c.l.b16 %v603
    %v612 = vunpack.c.l.b16 %v604
    %v613 = vpack.c.b16 %v610, %v609
    %v614 = vpack.c.b16 %v612, %v611
    %617 = vmatprep.subr.bf16.mxu0 0
    %618 = vmatpush1.bf16.msra.mxu0 %v613
    %619 = vmatprep.subr.bf16.mxu0 0
    %620 = vmatpush1.bf16.msra.mxu0 %v614
    %621 = vmatprep.subr.bf16.mxu0 0
    %622 = vmatpush1.bf16.msra.mxu0 0
    %623 = vmatprep.subr.bf16.mxu0 0
    %624 = vmatpush1.bf16.msra.mxu0 0
    %625 = vmatprep.subr.bf16.mxu0 0
    %626 = vmatpush1.bf16.msra.mxu0 0
    %627 = vmatprep.subr.bf16.mxu0 0
    %628 = vmatpush1.bf16.msra.mxu0 0
    %629 = vmatprep.subr.bf16.mxu0 0
    %630 = vmatpush1.bf16.msra.mxu0 0
    %631 = vmatprep.subr.bf16.mxu0 0
    %632 = vmatpush1.bf16.msra.mxu0 0
    %633 = vmatprep.subr.bf16.mxu0 0
    %634 = vmatpush1.bf16.msra.mxu0 0
    %635 = vmatprep.subr.bf16.mxu0 0
    %636 = vmatpush1.bf16.msra.mxu0 0
    %637 = vmatprep.subr.bf16.mxu0 0
    %638 = vmatpush1.bf16.msra.mxu0 0
    %639 = vmatprep.subr.bf16.mxu0 0
    %640 = vmatpush1.bf16.msra.mxu0 0
    %641 = vmatprep.subr.bf16.mxu0 0
    %642 = vmatpush1.bf16.msra.mxu0 0
    %643 = vmatprep.subr.bf16.mxu0 0
    %644 = vmatpush1.bf16.msra.mxu0 0
    %645 = vmatprep.subr.bf16.mxu0 0
    %646 = vmatpush1.bf16.msra.mxu0 0
    %647 = vmatprep.subr.bf16.mxu0 0
    %648 = vmatpush1.bf16.msra.mxu0 0
    %649 = vmatprep.mubr.bf16.mxu0 0
    %650 = vmatmul.mubr.bf16.gmra.mrb[0].mxu0 %v95
    %v651 = vpop.f32.mrb[0].mxu0
    %v652 = vadd.f32 0.0, %v651
    %v653 = vpop.f32.mrb[0].mxu0
    %v654 = vpop.f32.mrb[0].mxu0
    %v655 = vadd.f32 0.0, %v654
    %v656 = vpop.f32.mrb[0].mxu0
    %657 = vdwg.mxu0
    %s658 = scalar_lea.vmem %s5, 32
    %v659 = vld [vmem:[%s658] sm:$0xf]
    %v660 = vld [vmem:[%s658 + $0x4] sm:$0xf]
    %v661 = vld [vmem:[%s658 + $0x8] sm:$0xf]
    %v662 = vld [vmem:[%s658 + $0xc] sm:$0xf]
    %v667 = vunpack.c.l.b16 %v659
    %v668 = vunpack.c.l.b16 %v660
    %v669 = vunpack.c.l.b16 %v661
    %v670 = vunpack.c.l.b16 %v662
    %v671 = vpack.c.b16 %v668, %v667
    %v672 = vpack.c.b16 %v670, %v669
    %675 = vmatprep.subr.bf16.mxu0 0
    %676 = vmatpush1.bf16.msra.mxu0 %v671
    %677 = vmatprep.subr.bf16.mxu0 0
    %678 = vmatpush1.bf16.msra.mxu0 %v672
    %679 = vmatprep.subr.bf16.mxu0 0
    %680 = vmatpush1.bf16.msra.mxu0 0
    %681 = vmatprep.subr.bf16.mxu0 0
    %682 = vmatpush1.bf16.msra.mxu0 0
    %683 = vmatprep.subr.bf16.mxu0 0
    %684 = vmatpush1.bf16.msra.mxu0 0
    %685 = vmatprep.subr.bf16.mxu0 0
    %686 = vmatpush1.bf16.msra.mxu0 0
    %687 = vmatprep.subr.bf16.mxu0 0
    %688 = vmatpush1.bf16.msra.mxu0 0
    %689 = vmatprep.subr.bf16.mxu0 0
    %690 = vmatpush1.bf16.msra.mxu0 0
    %691 = vmatprep.subr.bf16.mxu0 0
    %692 = vmatpush1.bf16.msra.mxu0 0
    %693 = vmatprep.subr.bf16.mxu0 0
    %694 = vmatpush1.bf16.msra.mxu0 0
    %695 = vmatprep.subr.bf16.mxu0 0
    %696 = vmatpush1.bf16.msra.mxu0 0
    %697 = vmatprep.subr.bf16.mxu0 0
    %698 = vmatpush1.bf16.msra.mxu0 0
    %699 = vmatprep.subr.bf16.mxu0 0
    %700 = vmatpush1.bf16.msra.mxu0 0
    %701 = vmatprep.subr.bf16.mxu0 0
    %702 = vmatpush1.bf16.msra.mxu0 0
    %703 = vmatprep.subr.bf16.mxu0 0
    %704 = vmatpush1.bf16.msra.mxu0 0
    %705 = vmatprep.subr.bf16.mxu0 0
    %706 = vmatpush1.bf16.msra.mxu0 0
    %707 = vmatprep.mubr.bf16.mxu0 0
    %708 = vmatmul.mubr.bf16.gmra.mrb[0].mxu0 %v95
    %v709 = vpop.f32.mrb[0].mxu0
    %v710 = vadd.f32 0.0, %v709
    %v711 = vpop.f32.mrb[0].mxu0
    %v712 = vpop.f32.mrb[0].mxu0
    %v713 = vadd.f32 0.0, %v712
    %v714 = vpop.f32.mrb[0].mxu0
    %715 = vdwg.mxu0
    %s716 = scalar_lea.vmem %s5, 48
    %v717 = vld [vmem:[%s716] sm:$0xf]
    %v718 = vld [vmem:[%s716 + $0x4] sm:$0xf]
    %v719 = vld [vmem:[%s716 + $0x8] sm:$0xf]
    %v720 = vld [vmem:[%s716 + $0xc] sm:$0xf]
    %v725 = vunpack.c.l.b16 %v717
    %v726 = vunpack.c.l.b16 %v718
    %v727 = vunpack.c.l.b16 %v719
    %v728 = vunpack.c.l.b16 %v720
    %v729 = vpack.c.b16 %v726, %v725
    %v730 = vpack.c.b16 %v728, %v727
    %733 = vmatprep.subr.bf16.mxu0 0
    %734 = vmatpush1.bf16.msra.mxu0 %v729
    %735 = vmatprep.subr.bf16.mxu0 0
    %736 = vmatpush1.bf16.msra.mxu0 %v730
    %737 = vmatprep.subr.bf16.mxu0 0
    %738 = vmatpush1.bf16.msra.mxu0 0
    %739 = vmatprep.subr.bf16.mxu0 0
    %740 = vmatpush1.bf16.msra.mxu0 0
    %741 = vmatprep.subr.bf16.mxu0 0
    %742 = vmatpush1.bf16.msra.mxu0 0
    %743 = vmatprep.subr.bf16.mxu0 0
    %744 = vmatpush1.bf16.msra.mxu0 0
    %745 = vmatprep.subr.bf16.mxu0 0
    %746 = vmatpush1.bf16.msra.mxu0 0
    %747 = vmatprep.subr.bf16.mxu0 0
    %748 = vmatpush1.bf16.msra.mxu0 0
    %749 = vmatprep.subr.bf16.mxu0 0
    %750 = vmatpush1.bf16.msra.mxu0 0
    %751 = vmatprep.subr.bf16.mxu0 0
    %752 = vmatpush1.bf16.msra.mxu0 0
    %753 = vmatprep.subr.bf16.mxu0 0
    %754 = vmatpush1.bf16.msra.mxu0 0
    %755 = vmatprep.subr.bf16.mxu0 0
    %756 = vmatpush1.bf16.msra.mxu0 0
    %757 = vmatprep.subr.bf16.mxu0 0
    %758 = vmatpush1.bf16.msra.mxu0 0
    %759 = vmatprep.subr.bf16.mxu0 0
    %760 = vmatpush1.bf16.msra.mxu0 0
    %761 = vmatprep.subr.bf16.mxu0 0
    %762 = vmatpush1.bf16.msra.mxu0 0
    %763 = vmatprep.subr.bf16.mxu0 0
    %764 = vmatpush1.bf16.msra.mxu0 0
    %765 = vmatprep.mubr.bf16.mxu0 0
    %766 = vmatmul.mubr.bf16.gmra.mrb[0].mxu0 %v95
    %v767 = vpop.f32.mrb[0].mxu0
    %v768 = vadd.f32 0.0, %v767
    %v769 = vpop.f32.mrb[0].mxu0
    %v770 = vpop.f32.mrb[0].mxu0
    %v771 = vadd.f32 0.0, %v770
    %v772 = vpop.f32.mrb[0].mxu0
    %773 = vdwg.mxu0
    %v774 = vpack.c.bf16 %v135, %v132
    %v775 = vpack.c.bf16 %v193, %v190
    %v776 = vpack.c.bf16 %v251, %v248
    %v777 = vpack.c.bf16 %v309, %v306
    %v778 = vpack.c.bf16 %v366, %v363
    %v779 = vpack.c.bf16 %v424, %v421
    %v780 = vpack.c.bf16 %v482, %v479
    %v781 = vpack.c.bf16 %v540, %v537
    %vm782 = vcmask 64512
    %v784 = vsel %vm782, %v774, 0
    %v787 = vsel %vm782, %v778, 0
    %789 = vmatprep.subr.bf16.mxu0 0
    %790 = vmatpush1.bf16.xpose.msra.mxu0 %v787
    %791 = vmatprep.subr.bf16.mxu0 0
    %792 = vmatpush1.bf16.xpose.msra.mxu0 0
    %793 = vmatprep.subr.bf16.mxu0 0
    %794 = vmatpush1.bf16.xpose.msra.mxu0 0
    %795 = vmatprep.subr.bf16.mxu0 0
    %796 = vmatpush1.bf16.xpose.msra.mxu0 0
    %797 = vmatprep.subr.bf16.mxu0 0
    %798 = vmatpush1.bf16.xpose.msra.mxu0 0
    %799 = vmatprep.subr.bf16.mxu0 0
    %800 = vmatpush1.bf16.xpose.msra.mxu0 0
    %801 = vmatprep.subr.bf16.mxu0 0
    %802 = vmatpush1.bf16.xpose.msra.mxu0 0
    %803 = vmatprep.subr.bf16.mxu0 0
    %804 = vmatpush1.bf16.xpose.msra.mxu0 0
    %805 = vmatprep.subr.bf16.mxu0 0
    %806 = vmatpush1.bf16.xpose.msra.mxu0 0
    %807 = vmatprep.subr.bf16.mxu0 0
    %808 = vmatpush1.bf16.xpose.msra.mxu0 0
    %809 = vmatprep.subr.bf16.mxu0 0
    %810 = vmatpush1.bf16.xpose.msra.mxu0 0
    %811 = vmatprep.subr.bf16.mxu0 0
    %812 = vmatpush1.bf16.xpose.msra.mxu0 0
    %813 = vmatprep.subr.bf16.mxu0 0
    %814 = vmatpush1.bf16.xpose.msra.mxu0 0
    %815 = vmatprep.subr.bf16.mxu0 0
    %816 = vmatpush1.bf16.xpose.msra.mxu0 0
    %817 = vmatprep.subr.bf16.mxu0 0
    %818 = vmatpush1.bf16.xpose.msra.mxu0 0
    %819 = vmatprep.subr.bf16.mxu0 0
    %820 = vmatpush1.bf16.xpose.msra.mxu0 0
    %821 = vmatprep.mubr.bf16.mxu0 0
    %822 = vmatmul.mubr.bf16.gmra.mrb[0].mxu0 %v784
    %v823 = vpop.f32.mrb[0].mxu0
    %v824 = vadd.f32 0.0, %v823
    %v825 = vpop.f32.mrb[0].mxu0
    %v826 = vpop.f32.mrb[0].mxu0
    %v827 = vadd.f32 0.0, %v826
    %v828 = vpop.f32.mrb[0].mxu0
    %829 = vdwg.mxu0
    %v831 = vsel %vm782, %v775, 0
    %v834 = vsel %vm782, %v779, 0
    %836 = vmatprep.subr.bf16.mxu0 0
    %837 = vmatpush1.bf16.xpose.msra.mxu0 %v834
    %838 = vmatprep.subr.bf16.mxu0 0
    %839 = vmatpush1.bf16.xpose.msra.mxu0 0
    %840 = vmatprep.subr.bf16.mxu0 0
    %841 = vmatpush1.bf16.xpose.msra.mxu0 0
    %842 = vmatprep.subr.bf16.mxu0 0
    %843 = vmatpush1.bf16.xpose.msra.mxu0 0
    %844 = vmatprep.subr.bf16.mxu0 0
    %845 = vmatpush1.bf16.xpose.msra.mxu0 0
    %846 = vmatprep.subr.bf16.mxu0 0
    %847 = vmatpush1.bf16.xpose.msra.mxu0 0
    %848 = vmatprep.subr.bf16.mxu0 0
    %849 = vmatpush1.bf16.xpose.msra.mxu0 0
    %850 = vmatprep.subr.bf16.mxu0 0
    %851 = vmatpush1.bf16.xpose.msra.mxu0 0
    %852 = vmatprep.subr.bf16.mxu0 0
    %853 = vmatpush1.bf16.xpose.msra.mxu0 0
    %854 = vmatprep.subr.bf16.mxu0 0
    %855 = vmatpush1.bf16.xpose.msra.mxu0 0
    %856 = vmatprep.subr.bf16.mxu0 0
    %857 = vmatpush1.bf16.xpose.msra.mxu0 0
    %858 = vmatprep.subr.bf16.mxu0 0
    %859 = vmatpush1.bf16.xpose.msra.mxu0 0
    %860 = vmatprep.subr.bf16.mxu0 0
    %861 = vmatpush1.bf16.xpose.msra.mxu0 0
    %862 = vmatprep.subr.bf16.mxu0 0
    %863 = vmatpush1.bf16.xpose.msra.mxu0 0
    %864 = vmatprep.subr.bf16.mxu0 0
    %865 = vmatpush1.bf16.xpose.msra.mxu0 0
    %866 = vmatprep.subr.bf16.mxu0 0
    %867 = vmatpush1.bf16.xpose.msra.mxu0 0
    %868 = vmatprep.mubr.bf16.mxu0 0
    %869 = vmatmul.mubr.bf16.gmra.mrb[0].mxu0 %v831
    %v870 = vpop.f32.mrb[0].mxu0
    %v871 = vadd.f32 0.0, %v870
    %v872 = vpop.f32.mrb[0].mxu0
    %v873 = vpop.f32.mrb[0].mxu0
    %v874 = vadd.f32 0.0, %v873
    %v875 = vpop.f32.mrb[0].mxu0
    %876 = vdwg.mxu0
    %v878 = vsel %vm782, %v776, 0
    %v881 = vsel %vm782, %v780, 0
    %883 = vmatprep.subr.bf16.mxu0 0
    %884 = vmatpush1.bf16.xpose.msra.mxu0 %v881
    %885 = vmatprep.subr.bf16.mxu0 0
    %886 = vmatpush1.bf16.xpose.msra.mxu0 0
    %887 = vmatprep.subr.bf16.mxu0 0
    %888 = vmatpush1.bf16.xpose.msra.mxu0 0
    %889 = vmatprep.subr.bf16.mxu0 0
    %890 = vmatpush1.bf16.xpose.msra.mxu0 0
    %891 = vmatprep.subr.bf16.mxu0 0
    %892 = vmatpush1.bf16.xpose.msra.mxu0 0
    %893 = vmatprep.subr.bf16.mxu0 0
    %894 = vmatpush1.bf16.xpose.msra.mxu0 0
    %895 = vmatprep.subr.bf16.mxu0 0
    %896 = vmatpush1.bf16.xpose.msra.mxu0 0
    %897 = vmatprep.subr.bf16.mxu0 0
    %898 = vmatpush1.bf16.xpose.msra.mxu0 0
    %899 = vmatprep.subr.bf16.mxu0 0
    %900 = vmatpush1.bf16.xpose.msra.mxu0 0
    %901 = vmatprep.subr.bf16.mxu0 0
    %902 = vmatpush1.bf16.xpose.msra.mxu0 0
    %903 = vmatprep.subr.bf16.mxu0 0
    %904 = vmatpush1.bf16.xpose.msra.mxu0 0
    %905 = vmatprep.subr.bf16.mxu0 0
    %906 = vmatpush1.bf16.xpose.msra.mxu0 0
    %907 = vmatprep.subr.bf16.mxu0 0
    %908 = vmatpush1.bf16.xpose.msra.mxu0 0
    %909 = vmatprep.subr.bf16.mxu0 0
    %910 = vmatpush1.bf16.xpose.msra.mxu0 0
    %911 = vmatprep.subr.bf16.mxu0 0
    %912 = vmatpush1.bf16.xpose.msra.mxu0 0
    %913 = vmatprep.subr.bf16.mxu0 0
    %914 = vmatpush1.bf16.xpose.msra.mxu0 0
    %915 = vmatprep.mubr.bf16.mxu0 0
    %916 = vmatmul.mubr.bf16.gmra.mrb[0].mxu0 %v878
    %v917 = vpop.f32.mrb[0].mxu0
    %v918 = vadd.f32 0.0, %v917
    %v919 = vpop.f32.mrb[0].mxu0
    %v920 = vpop.f32.mrb[0].mxu0
    %v921 = vadd.f32 0.0, %v920
    %v922 = vpop.f32.mrb[0].mxu0
    %923 = vdwg.mxu0
    %v925 = vsel %vm782, %v777, 0
    %v928 = vsel %vm782, %v781, 0
    %930 = vmatprep.subr.bf16.mxu0 0
    %931 = vmatpush1.bf16.xpose.msra.mxu0 %v928
    %932 = vmatprep.subr.bf16.mxu0 0
    %933 = vmatpush1.bf16.xpose.msra.mxu0 0
    %934 = vmatprep.subr.bf16.mxu0 0
    %935 = vmatpush1.bf16.xpose.msra.mxu0 0
    %936 = vmatprep.subr.bf16.mxu0 0
    %937 = vmatpush1.bf16.xpose.msra.mxu0 0
    %938 = vmatprep.subr.bf16.mxu0 0
    %939 = vmatpush1.bf16.xpose.msra.mxu0 0
    %940 = vmatprep.subr.bf16.mxu0 0
    %941 = vmatpush1.bf16.xpose.msra.mxu0 0
    %942 = vmatprep.subr.bf16.mxu0 0
    %943 = vmatpush1.bf16.xpose.msra.mxu0 0
    %944 = vmatprep.subr.bf16.mxu0 0
    %945 = vmatpush1.bf16.xpose.msra.mxu0 0
    %946 = vmatprep.subr.bf16.mxu0 0
    %947 = vmatpush1.bf16.xpose.msra.mxu0 0
    %948 = vmatprep.subr.bf16.mxu0 0
    %949 = vmatpush1.bf16.xpose.msra.mxu0 0
    %950 = vmatprep.subr.bf16.mxu0 0
    %951 = vmatpush1.bf16.xpose.msra.mxu0 0
    %952 = vmatprep.subr.bf16.mxu0 0
    %953 = vmatpush1.bf16.xpose.msra.mxu0 0
    %954 = vmatprep.subr.bf16.mxu0 0
    %955 = vmatpush1.bf16.xpose.msra.mxu0 0
    %956 = vmatprep.subr.bf16.mxu0 0
    %957 = vmatpush1.bf16.xpose.msra.mxu0 0
    %958 = vmatprep.subr.bf16.mxu0 0
    %959 = vmatpush1.bf16.xpose.msra.mxu0 0
    %960 = vmatprep.subr.bf16.mxu0 0
    %961 = vmatpush1.bf16.xpose.msra.mxu0 0
    %962 = vmatprep.mubr.bf16.mxu0 0
    %963 = vmatmul.mubr.bf16.gmra.mrb[0].mxu0 %v925
    %v964 = vpop.f32.mrb[0].mxu0
    %v965 = vadd.f32 0.0, %v964
    %v966 = vpop.f32.mrb[0].mxu0
    %v967 = vpop.f32.mrb[0].mxu0
    %v968 = vadd.f32 0.0, %v967
    %v969 = vpop.f32.mrb[0].mxu0
    %970 = vdwg.mxu0
    %v971 = vmul.f32 %v824, 0.35355338
    %v972 = vmul.f32 %v827, 0.35355338
    %v973 = vmul.f32 %v871, 0.35355338
    %v974 = vmul.f32 %v874, 0.35355338
    %v975 = vmul.f32 %v918, 0.35355338
    %v976 = vmul.f32 %v921, 0.35355338
    %v977 = vmul.f32 %v965, 0.35355338
    %v978 = vmul.f32 %v968, 0.35355338
    %v979 = vadd.f32 %v971, %v39
    %v980 = vadd.f32 %v972, %v40
    %v981 = vadd.f32 %v973, %v39
    %v982 = vadd.f32 %v974, %v40
    %v983 = vadd.f32 %v975, %v39
    %v984 = vadd.f32 %v976, %v40
    %v985 = vadd.f32 %v977, %v39
    %v986 = vadd.f32 %v978, %v40
    %vm987 = vcmask 130048
    %v988 = vsel %vm987, %v979, -inf
    %989 = vmax.xlane.f32.xlu0 %v988
    %v990 = vpop.xlane.xlu0 %989
    %v991 = vsel %vm987, %v980, -inf
    %992 = vmax.xlane.f32.xlu0 %v991
    %v993 = vpop.xlane.xlu0 %992
    %v994 = vsel %vm987, %v981, -inf
    %995 = vmax.xlane.f32.xlu0 %v994
    %v996 = vpop.xlane.xlu0 %995
    %v997 = vsel %vm987, %v982, -inf
    %998 = vmax.xlane.f32.xlu0 %v997
    %v999 = vpop.xlane.xlu0 %998
    %v1000 = vsel %vm987, %v983, -inf
    %1001 = vmax.xlane.f32.xlu0 %v1000
    %v1002 = vpop.xlane.xlu0 %1001
    %v1003 = vsel %vm987, %v984, -inf
    %1004 = vmax.xlane.f32.xlu0 %v1003
    %v1005 = vpop.xlane.xlu0 %1004
    %v1006 = vsel %vm987, %v985, -inf
    %1007 = vmax.xlane.f32.xlu0 %v1006
    %v1008 = vpop.xlane.xlu0 %1007
    %v1009 = vsel %vm987, %v986, -inf
    %1010 = vmax.xlane.f32.xlu0 %v1009
    %v1011 = vpop.xlane.xlu0 %1010
    %v1012 = vsub.f32 %v979, %v990
    %v1013 = vsub.f32 %v980, %v993
    %v1014 = vsub.f32 %v981, %v996
    %v1015 = vsub.f32 %v982, %v999
    %v1016 = vsub.f32 %v983, %v1002
    %v1017 = vsub.f32 %v984, %v1005
    %v1018 = vsub.f32 %v985, %v1008
    %v1019 = vsub.f32 %v986, %v1011
    %v1020 = vmul.f32 %v1012, 1.442695
    %v1021 = vpow.pop %v1020
    %v1022 = vmul.f32 %v1013, 1.442695
    %v1023 = vpow.pop %v1022
    %v1024 = vmul.f32 %v1014, 1.442695
    %v1025 = vpow.pop %v1024
    %v1026 = vmul.f32 %v1015, 1.442695
    %v1027 = vpow.pop %v1026
    %v1028 = vmul.f32 %v1016, 1.442695
    %v1029 = vpow.pop %v1028
    %v1030 = vmul.f32 %v1017, 1.442695
    %v1031 = vpow.pop %v1030
    %v1032 = vmul.f32 %v1018, 1.442695
    %v1033 = vpow.pop %v1032
    %v1034 = vmul.f32 %v1019, 1.442695
    %v1035 = vpow.pop %v1034
    %v1036 = vsel %vm987, %v1021, 0.0
    %1037 = vadd.xlane.f32.xlu0 %v1036
    %v1038 = vpop.xlane.xlu0 %1037
    %v1039 = vsel %vm987, %v1023, 0.0
    %1040 = vadd.xlane.f32.xlu0 %v1039
    %v1041 = vpop.xlane.xlu0 %1040
    %v1042 = vsel %vm987, %v1025, 0.0
    %1043 = vadd.xlane.f32.xlu0 %v1042
    %v1044 = vpop.xlane.xlu0 %1043
    %v1045 = vsel %vm987, %v1027, 0.0
    %1046 = vadd.xlane.f32.xlu0 %v1045
    %v1047 = vpop.xlane.xlu0 %1046
    %v1048 = vsel %vm987, %v1029, 0.0
    %1049 = vadd.xlane.f32.xlu0 %v1048
    %v1050 = vpop.xlane.xlu0 %1049
    %v1051 = vsel %vm987, %v1031, 0.0
    %1052 = vadd.xlane.f32.xlu0 %v1051
    %v1053 = vpop.xlane.xlu0 %1052
    %v1054 = vsel %vm987, %v1033, 0.0
    %1055 = vadd.xlane.f32.xlu0 %v1054
    %v1056 = vpop.xlane.xlu0 %1055
    %v1057 = vsel %vm987, %v1035, 0.0
    %1058 = vadd.xlane.f32.xlu0 %v1057
    %v1059 = vpop.xlane.xlu0 %1058
    %v1060 = vrcp.pop %v1038
    %v1061 = vrcp.pop %v1041
    %v1062 = vrcp.pop %v1044
    %v1063 = vrcp.pop %v1047
    %v1064 = vrcp.pop %v1050
    %v1065 = vrcp.pop %v1053
    %v1066 = vrcp.pop %v1056
    %v1067 = vrcp.pop %v1059
    %v1068 = vmul.f32 %v1021, %v1060
    %v1069 = vmul.f32 %v1023, %v1061
    %v1070 = vmul.f32 %v1025, %v1062
    %v1071 = vmul.f32 %v1027, %v1063
    %v1072 = vmul.f32 %v1029, %v1064
    %v1073 = vmul.f32 %v1031, %v1065
    %v1074 = vmul.f32 %v1033, %v1066
    %v1075 = vmul.f32 %v1035, %v1067
    %v1076 = vpack.c.bf16 %v1069, %v1068
    %v1077 = vpack.c.bf16 %v1071, %v1070
    %v1078 = vpack.c.bf16 %v1073, %v1072
    %v1079 = vpack.c.bf16 %v1075, %v1074
    %v1080 = vpack.c.bf16 %v597, %v594
    %v1081 = vpack.c.bf16 %v655, %v652
    %v1082 = vpack.c.bf16 %v713, %v710
    %v1083 = vpack.c.bf16 %v771, %v768
    %v1085 = vsel %vm987, %v1076, 0
    %1087 = vmatprep.subr.bf16.mxu0 0
    %1088 = vmatpush1.bf16.msra.mxu0 %v1080
    %1089 = vmatprep.subr.bf16.mxu0 0
    %1090 = vmatpush1.bf16.msra.mxu0 0
    %1091 = vmatprep.subr.bf16.mxu0 0
    %1092 = vmatpush1.bf16.msra.mxu0 0
    %1093 = vmatprep.subr.bf16.mxu0 0
    %1094 = vmatpush1.bf16.msra.mxu0 0
    %1095 = vmatprep.subr.bf16.mxu0 0
    %1096 = vmatpush1.bf16.msra.mxu0 0
    %1097 = vmatprep.subr.bf16.mxu0 0
    %1098 = vmatpush1.bf16.msra.mxu0 0
    %1099 = vmatprep.subr.bf16.mxu0 0
    %1100 = vmatpush1.bf16.msra.mxu0 0
    %1101 = vmatprep.subr.bf16.mxu0 0
    %1102 = vmatpush1.bf16.msra.mxu0 0
    %1103 = vmatprep.subr.bf16.mxu0 0
    %1104 = vmatpush1.bf16.msra.mxu0 0
    %1105 = vmatprep.subr.bf16.mxu0 0
    %1106 = vmatpush1.bf16.msra.mxu0 0
    %1107 = vmatprep.subr.bf16.mxu0 0
    %1108 = vmatpush1.bf16.msra.mxu0 0
    %1109 = vmatprep.subr.bf16.mxu0 0
    %1110 = vmatpush1.bf16.msra.mxu0 0
    %1111 = vmatprep.subr.bf16.mxu0 0
    %1112 = vmatpush1.bf16.msra.mxu0 0
    %1113 = vmatprep.subr.bf16.mxu0 0
    %1114 = vmatpush1.bf16.msra.mxu0 0
    %1115 = vmatprep.subr.bf16.mxu0 0
    %1116 = vmatpush1.bf16.msra.mxu0 0
    %1117 = vmatprep.subr.bf16.mxu0 0
    %1118 = vmatpush1.bf16.msra.mxu0 0
    %1119 = vmatprep.mubr.bf16.mxu0 0
    %1120 = vmatmul.mubr.bf16.gmra.mrb[0].mxu0 %v1085
    %v1121 = vpop.f32.mrb[0].mxu0
    %v1122 = vadd.f32 0.0, %v1121
    %v1123 = vpop.f32.mrb[0].mxu0
    %v1124 = vpop.f32.mrb[0].mxu0
    %v1125 = vadd.f32 0.0, %v1124
    %v1126 = vpop.f32.mrb[0].mxu0
    %1127 = vdwg.mxu0
    %v1129 = vsel %vm987, %v1077, 0
    %1131 = vmatprep.subr.bf16.mxu0 0
    %1132 = vmatpush1.bf16.msra.mxu0 %v1081
    %1133 = vmatprep.subr.bf16.mxu0 0
    %1134 = vmatpush1.bf16.msra.mxu0 0
    %1135 = vmatprep.subr.bf16.mxu0 0
    %1136 = vmatpush1.bf16.msra.mxu0 0
    %1137 = vmatprep.subr.bf16.mxu0 0
    %1138 = vmatpush1.bf16.msra.mxu0 0
    %1139 = vmatprep.subr.bf16.mxu0 0
    %1140 = vmatpush1.bf16.msra.mxu0 0
    %1141 = vmatprep.subr.bf16.mxu0 0
    %1142 = vmatpush1.bf16.msra.mxu0 0
    %1143 = vmatprep.subr.bf16.mxu0 0
    %1144 = vmatpush1.bf16.msra.mxu0 0
    %1145 = vmatprep.subr.bf16.mxu0 0
    %1146 = vmatpush1.bf16.msra.mxu0 0
    %1147 = vmatprep.subr.bf16.mxu0 0
    %1148 = vmatpush1.bf16.msra.mxu0 0
    %1149 = vmatprep.subr.bf16.mxu0 0
    %1150 = vmatpush1.bf16.msra.mxu0 0
    %1151 = vmatprep.subr.bf16.mxu0 0
    %1152 = vmatpush1.bf16.msra.mxu0 0
    %1153 = vmatprep.subr.bf16.mxu0 0
    %1154 = vmatpush1.bf16.msra.mxu0 0
    %1155 = vmatprep.subr.bf16.mxu0 0
    %1156 = vmatpush1.bf16.msra.mxu0 0
    %1157 = vmatprep.subr.bf16.mxu0 0
    %1158 = vmatpush1.bf16.msra.mxu0 0
    %1159 = vmatprep.subr.bf16.mxu0 0
    %1160 = vmatpush1.bf16.msra.mxu0 0
    %1161 = vmatprep.subr.bf16.mxu0 0
    %1162 = vmatpush1.bf16.msra.mxu0 0
    %1163 = vmatprep.mubr.bf16.mxu0 0
    %1164 = vmatmul.mubr.bf16.gmra.mrb[0].mxu0 %v1129
    %v1165 = vpop.f32.mrb[0].mxu0
    %v1166 = vadd.f32 0.0, %v1165
    %v1167 = vpop.f32.mrb[0].mxu0
    %v1168 = vpop.f32.mrb[0].mxu0
    %v1169 = vadd.f32 0.0, %v1168
    %v1170 = vpop.f32.mrb[0].mxu0
    %1171 = vdwg.mxu0
    %v1173 = vsel %vm987, %v1078, 0
    %1175 = vmatprep.subr.bf16.mxu0 0
    %1176 = vmatpush1.bf16.msra.mxu0 %v1082
    %1177 = vmatprep.subr.bf16.mxu0 0
    %1178 = vmatpush1.bf16.msra.mxu0 0
    %1179 = vmatprep.subr.bf16.mxu0 0
    %1180 = vmatpush1.bf16.msra.mxu0 0
    %1181 = vmatprep.subr.bf16.mxu0 0
    %1182 = vmatpush1.bf16.msra.mxu0 0
    %1183 = vmatprep.subr.bf16.mxu0 0
    %1184 = vmatpush1.bf16.msra.mxu0 0
    %1185 = vmatprep.subr.bf16.mxu0 0
    %1186 = vmatpush1.bf16.msra.mxu0 0
    %1187 = vmatprep.subr.bf16.mxu0 0
    %1188 = vmatpush1.bf16.msra.mxu0 0
    %1189 = vmatprep.subr.bf16.mxu0 0
    %1190 = vmatpush1.bf16.msra.mxu0 0
    %1191 = vmatprep.subr.bf16.mxu0 0
    %1192 = vmatpush1.bf16.msra.mxu0 0
    %1193 = vmatprep.subr.bf16.mxu0 0
    %1194 = vmatpush1.bf16.msra.mxu0 0
    %1195 = vmatprep.subr.bf16.mxu0 0
    %1196 = vmatpush1.bf16.msra.mxu0 0
    %1197 = vmatprep.subr.bf16.mxu0 0
    %1198 = vmatpush1.bf16.msra.mxu0 0
    %1199 = vmatprep.subr.bf16.mxu0 0
    %1200 = vmatpush1.bf16.msra.mxu0 0
    %1201 = vmatprep.subr.bf16.mxu0 0
    %1202 = vmatpush1.bf16.msra.mxu0 0
    %1203 = vmatprep.subr.bf16.mxu0 0
    %1204 = vmatpush1.bf16.msra.mxu0 0
    %1205 = vmatprep.subr.bf16.mxu0 0
    %1206 = vmatpush1.bf16.msra.mxu0 0
    %1207 = vmatprep.mubr.bf16.mxu0 0
    %1208 = vmatmul.mubr.bf16.gmra.mrb[0].mxu0 %v1173
    %v1209 = vpop.f32.mrb[0].mxu0
    %v1210 = vadd.f32 0.0, %v1209
    %v1211 = vpop.f32.mrb[0].mxu0
    %v1212 = vpop.f32.mrb[0].mxu0
    %v1213 = vadd.f32 0.0, %v1212
    %v1214 = vpop.f32.mrb[0].mxu0
    %1215 = vdwg.mxu0
    %v1217 = vsel %vm987, %v1079, 0
    %1219 = vmatprep.subr.bf16.mxu0 0
    %1220 = vmatpush1.bf16.msra.mxu0 %v1083
    %1221 = vmatprep.subr.bf16.mxu0 0
    %1222 = vmatpush1.bf16.msra.mxu0 0
    %1223 = vmatprep.subr.bf16.mxu0 0
    %1224 = vmatpush1.bf16.msra.mxu0 0
    %1225 = vmatprep.subr.bf16.mxu0 0
    %1226 = vmatpush1.bf16.msra.mxu0 0
    %1227 = vmatprep.subr.bf16.mxu0 0
    %1228 = vmatpush1.bf16.msra.mxu0 0
    %1229 = vmatprep.subr.bf16.mxu0 0
    %1230 = vmatpush1.bf16.msra.mxu0 0
    %1231 = vmatprep.subr.bf16.mxu0 0
    %1232 = vmatpush1.bf16.msra.mxu0 0
    %1233 = vmatprep.subr.bf16.mxu0 0
    %1234 = vmatpush1.bf16.msra.mxu0 0
    %1235 = vmatprep.subr.bf16.mxu0 0
    %1236 = vmatpush1.bf16.msra.mxu0 0
    %1237 = vmatprep.subr.bf16.mxu0 0
    %1238 = vmatpush1.bf16.msra.mxu0 0
    %1239 = vmatprep.subr.bf16.mxu0 0
    %1240 = vmatpush1.bf16.msra.mxu0 0
    %1241 = vmatprep.subr.bf16.mxu0 0
    %1242 = vmatpush1.bf16.msra.mxu0 0
    %1243 = vmatprep.subr.bf16.mxu0 0
    %1244 = vmatpush1.bf16.msra.mxu0 0
    %1245 = vmatprep.subr.bf16.mxu0 0
    %1246 = vmatpush1.bf16.msra.mxu0 0
    %1247 = vmatprep.subr.bf16.mxu0 0
    %1248 = vmatpush1.bf16.msra.mxu0 0
    %1249 = vmatprep.subr.bf16.mxu0 0
    %1250 = vmatpush1.bf16.msra.mxu0 0
    %1251 = vmatprep.mubr.bf16.mxu0 0
    %1252 = vmatmul.mubr.bf16.gmra.mrb[0].mxu0 %v1217
    %v1253 = vpop.f32.mrb[0].mxu0
    %v1254 = vadd.f32 0.0, %v1253
    %v1255 = vpop.f32.mrb[0].mxu0
    %v1256 = vpop.f32.mrb[0].mxu0
    %v1257 = vadd.f32 0.0, %v1256
    %v1258 = vpop.f32.mrb[0].mxu0
    %1259 = vdwg.mxu0
    %v1260 = vpack.c.bf16 %v1125, %v1122
    %v1261 = vld [vmem:[%s6] sm:$0xf]
    %v1263 = vsel %vm782, %v1260, 0
    %vm1265 = vcmask 1043456
    %v1267 = vsel %vm1265, %v1261, 0
    %1269 = vmatprep.subr.bf16.mxu0 0
    %1270 = vmatpush1.bf16.msra.mxu0 %v1267
    %1271 = vmatprep.subr.bf16.mxu0 0
    %1272 = vmatpush1.bf16.msra.mxu0 0
    %1273 = vmatprep.subr.bf16.mxu0 0
    %1274 = vmatpush1.bf16.msra.mxu0 0
    %1275 = vmatprep.subr.bf16.mxu0 0
    %1276 = vmatpush1.bf16.msra.mxu0 0
    %1277 = vmatprep.subr.bf16.mxu0 0
    %1278 = vmatpush1.bf16.msra.mxu0 0
    %1279 = vmatprep.subr.bf16.mxu0 0
    %1280 = vmatpush1.bf16.msra.mxu0 0
    %1281 = vmatprep.subr.bf16.mxu0 0
    %1282 = vmatpush1.bf16.msra.mxu0 0
    %1283 = vmatprep.subr.bf16.mxu0 0
    %1284 = vmatpush1.bf16.msra.mxu0 0
    %1285 = vmatprep.subr.bf16.mxu0 0
    %1286 = vmatpush1.bf16.msra.mxu0 0
    %1287 = vmatprep.subr.bf16.mxu0 0
    %1288 = vmatpush1.bf16.msra.mxu0 0
    %1289 = vmatprep.subr.bf16.mxu0 0
    %1290 = vmatpush1.bf16.msra.mxu0 0
    %1291 = vmatprep.subr.bf16.mxu0 0
    %1292 = vmatpush1.bf16.msra.mxu0 0
    %1293 = vmatprep.subr.bf16.mxu0 0
    %1294 = vmatpush1.bf16.msra.mxu0 0
    %1295 = vmatprep.subr.bf16.mxu0 0
    %1296 = vmatpush1.bf16.msra.mxu0 0
    %1297 = vmatprep.subr.bf16.mxu0 0
    %1298 = vmatpush1.bf16.msra.mxu0 0
    %1299 = vmatprep.subr.bf16.mxu0 0
    %1300 = vmatpush1.bf16.msra.mxu0 0
    %1301 = vmatprep.mubr.bf16.mxu0 0
    %1302 = vmatmul.mubr.bf16.gmra.mrb[0].mxu0 %v1263
    %v1303 = vpop.f32.mrb[0].mxu0
    %v1304 = vadd.f32 0.0, %v1303
    %v1305 = vpop.f32.mrb[0].mxu0
    %v1306 = vpop.f32.mrb[0].mxu0
    %v1307 = vadd.f32 0.0, %v1306
    %v1308 = vpop.f32.mrb[0].mxu0
    %1309 = vdwg.mxu0
    %v1310 = vadd.f32 %v36, %v1304
    %v1311 = vadd.f32 %v37, %v1307
    %v1312 = vpack.c.bf16 %v1169, %v1166
    %s1313 = scalar_lea.vmem %s6, 4
    %v1314 = vld [vmem:[%s1313] sm:$0xf]
    %v1316 = vsel %vm782, %v1312, 0
    %v1319 = vsel %vm1265, %v1314, 0
    %1321 = vmatprep.subr.bf16.mxu0 0
    %1322 = vmatpush1.bf16.msra.mxu0 %v1319
    %1323 = vmatprep.subr.bf16.mxu0 0
    %1324 = vmatpush1.bf16.msra.mxu0 0
    %1325 = vmatprep.subr.bf16.mxu0 0
    %1326 = vmatpush1.bf16.msra.mxu0 0
    %1327 = vmatprep.subr.bf16.mxu0 0
    %1328 = vmatpush1.bf16.msra.mxu0 0
    %1329 = vmatprep.subr.bf16.mxu0 0
    %1330 = vmatpush1.bf16.msra.mxu0 0
    %1331 = vmatprep.subr.bf16.mxu0 0
    %1332 = vmatpush1.bf16.msra.mxu0 0
    %1333 = vmatprep.subr.bf16.mxu0 0
    %1334 = vmatpush1.bf16.msra.mxu0 0
    %1335 = vmatprep.subr.bf16.mxu0 0
    %1336 = vmatpush1.bf16.msra.mxu0 0
    %1337 = vmatprep.subr.bf16.mxu0 0
    %1338 = vmatpush1.bf16.msra.mxu0 0
    %1339 = vmatprep.subr.bf16.mxu0 0
    %1340 = vmatpush1.bf16.msra.mxu0 0
    %1341 = vmatprep.subr.bf16.mxu0 0
    %1342 = vmatpush1.bf16.msra.mxu0 0
    %1343 = vmatprep.subr.bf16.mxu0 0
    %1344 = vmatpush1.bf16.msra.mxu0 0
    %1345 = vmatprep.subr.bf16.mxu0 0
    %1346 = vmatpush1.bf16.msra.mxu0 0
    %1347 = vmatprep.subr.bf16.mxu0 0
    %1348 = vmatpush1.bf16.msra.mxu0 0
    %1349 = vmatprep.subr.bf16.mxu0 0
    %1350 = vmatpush1.bf16.msra.mxu0 0
    %1351 = vmatprep.subr.bf16.mxu0 0
    %1352 = vmatpush1.bf16.msra.mxu0 0
    %1353 = vmatprep.mubr.bf16.mxu0 0
    %1354 = vmatmul.mubr.bf16.gmra.mrb[0].mxu0 %v1316
    %v1355 = vpop.f32.mrb[0].mxu0
    %v1356 = vadd.f32 0.0, %v1355
    %v1357 = vpop.f32.mrb[0].mxu0
    %v1358 = vpop.f32.mrb[0].mxu0
    %v1359 = vadd.f32 0.0, %v1358
    %v1360 = vpop.f32.mrb[0].mxu0
    %1361 = vdwg.mxu0
    %v1362 = vadd.f32 %v1310, %v1356
    %v1363 = vadd.f32 %v1311, %v1359
    %v1364 = vpack.c.bf16 %v1213, %v1210
    %s1365 = scalar_lea.vmem %s6, 8
    %v1366 = vld [vmem:[%s1365] sm:$0xf]
    %v1368 = vsel %vm782, %v1364, 0
    %v1371 = vsel %vm1265, %v1366, 0
    %1373 = vmatprep.subr.bf16.mxu0 0
    %1374 = vmatpush1.bf16.msra.mxu0 %v1371
    %1375 = vmatprep.subr.bf16.mxu0 0
    %1376 = vmatpush1.bf16.msra.mxu0 0
    %1377 = vmatprep.subr.bf16.mxu0 0
    %1378 = vmatpush1.bf16.msra.mxu0 0
    %1379 = vmatprep.subr.bf16.mxu0 0
    %1380 = vmatpush1.bf16.msra.mxu0 0
    %1381 = vmatprep.subr.bf16.mxu0 0
    %1382 = vmatpush1.bf16.msra.mxu0 0
    %1383 = vmatprep.subr.bf16.mxu0 0
    %1384 = vmatpush1.bf16.msra.mxu0 0
    %1385 = vmatprep.subr.bf16.mxu0 0
    %1386 = vmatpush1.bf16.msra.mxu0 0
    %1387 = vmatprep.subr.bf16.mxu0 0
    %1388 = vmatpush1.bf16.msra.mxu0 0
    %1389 = vmatprep.subr.bf16.mxu0 0
    %1390 = vmatpush1.bf16.msra.mxu0 0
    %1391 = vmatprep.subr.bf16.mxu0 0
    %1392 = vmatpush1.bf16.msra.mxu0 0
    %1393 = vmatprep.subr.bf16.mxu0 0
    %1394 = vmatpush1.bf16.msra.mxu0 0
    %1395 = vmatprep.subr.bf16.mxu0 0
    %1396 = vmatpush1.bf16.msra.mxu0 0
    %1397 = vmatprep.subr.bf16.mxu0 0
    %1398 = vmatpush1.bf16.msra.mxu0 0
    %1399 = vmatprep.subr.bf16.mxu0 0
    %1400 = vmatpush1.bf16.msra.mxu0 0
    %1401 = vmatprep.subr.bf16.mxu0 0
    %1402 = vmatpush1.bf16.msra.mxu0 0
    %1403 = vmatprep.subr.bf16.mxu0 0
    %1404 = vmatpush1.bf16.msra.mxu0 0
    %1405 = vmatprep.mubr.bf16.mxu0 0
    %1406 = vmatmul.mubr.bf16.gmra.mrb[0].mxu0 %v1368
    %v1407 = vpop.f32.mrb[0].mxu0
    %v1408 = vadd.f32 0.0, %v1407
    %v1409 = vpop.f32.mrb[0].mxu0
    %v1410 = vpop.f32.mrb[0].mxu0
    %v1411 = vadd.f32 0.0, %v1410
    %v1412 = vpop.f32.mrb[0].mxu0
    %1413 = vdwg.mxu0
    %v1414 = vadd.f32 %v1362, %v1408
    %v1415 = vadd.f32 %v1363, %v1411
    %v1416 = vpack.c.bf16 %v1257, %v1254
    %s1417 = scalar_lea.vmem %s6, 12
    %v1418 = vld [vmem:[%s1417] sm:$0xf]
    %v1420 = vsel %vm782, %v1416, 0
    %v1423 = vsel %vm1265, %v1418, 0
    %1425 = vmatprep.subr.bf16.mxu0 0
    %1426 = vmatpush1.bf16.msra.mxu0 %v1423
    %1427 = vmatprep.subr.bf16.mxu0 0
    %1428 = vmatpush1.bf16.msra.mxu0 0
    %1429 = vmatprep.subr.bf16.mxu0 0
    %1430 = vmatpush1.bf16.msra.mxu0 0
    %1431 = vmatprep.subr.bf16.mxu0 0
    %1432 = vmatpush1.bf16.msra.mxu0 0
    %1433 = vmatprep.subr.bf16.mxu0 0
    %1434 = vmatpush1.bf16.msra.mxu0 0
    %1435 = vmatprep.subr.bf16.mxu0 0
    %1436 = vmatpush1.bf16.msra.mxu0 0
    %1437 = vmatprep.subr.bf16.mxu0 0
    %1438 = vmatpush1.bf16.msra.mxu0 0
    %1439 = vmatprep.subr.bf16.mxu0 0
    %1440 = vmatpush1.bf16.msra.mxu0 0
    %1441 = vmatprep.subr.bf16.mxu0 0
    %1442 = vmatpush1.bf16.msra.mxu0 0
    %1443 = vmatprep.subr.bf16.mxu0 0
    %1444 = vmatpush1.bf16.msra.mxu0 0
    %1445 = vmatprep.subr.bf16.mxu0 0
    %1446 = vmatpush1.bf16.msra.mxu0 0
    %1447 = vmatprep.subr.bf16.mxu0 0
    %1448 = vmatpush1.bf16.msra.mxu0 0
    %1449 = vmatprep.subr.bf16.mxu0 0
    %1450 = vmatpush1.bf16.msra.mxu0 0
    %1451 = vmatprep.subr.bf16.mxu0 0
    %1452 = vmatpush1.bf16.msra.mxu0 0
    %1453 = vmatprep.subr.bf16.mxu0 0
    %1454 = vmatpush1.bf16.msra.mxu0 0
    %1455 = vmatprep.subr.bf16.mxu0 0
    %1456 = vmatpush1.bf16.msra.mxu0 0
    %1457 = vmatprep.mubr.bf16.mxu0 0
    %1458 = vmatmul.mubr.bf16.gmra.mrb[0].mxu0 %v1420
    %v1459 = vpop.f32.mrb[0].mxu0
    %v1460 = vadd.f32 0.0, %v1459
    %v1461 = vpop.f32.mrb[0].mxu0
    %v1462 = vpop.f32.mrb[0].mxu0
    %v1463 = vadd.f32 0.0, %v1462
    %v1464 = vpop.f32.mrb[0].mxu0
    %1465 = vdwg.mxu0
    %v1466 = vadd.f32 %v1414, %v1460
    %v1467 = vadd.f32 %v1415, %v1463
    %v1468 = vsel %vm41, %v1466, 0.0
    %1469 = vadd.xlane.f32.xlu0 %v1468
    %v1470 = vpop.xlane.xlu0 %1469
    %v1471 = vsel %vm41, %v1467, 0.0
    %1472 = vadd.xlane.f32.xlu0 %v1471
    %v1473 = vpop.xlane.xlu0 %1472
    %v1474 = vmul.f32 %v1470, %v48
    %v1475 = vmul.f32 %v1473, %v48
    %v1476 = vsub.f32 %v1466, %v1474
    %v1477 = vsub.f32 %v1467, %v1475
    %v1478 = vmul.f32 %v1476, %v1476
    %v1479 = vmul.f32 %v1477, %v1477
    %v1480 = vsel %vm41, %v1478, 0.0
    %1481 = vadd.xlane.f32.xlu0 %v1480
    %v1482 = vpop.xlane.xlu0 %1481
    %v1483 = vsel %vm41, %v1479, 0.0
    %1484 = vadd.xlane.f32.xlu0 %v1483
    %v1485 = vpop.xlane.xlu0 %1484
    %v1486 = vmul.f32 %v1482, %v48
    %v1487 = vmul.f32 %v1485, %v48
    %v1488 = vadd.f32 %v1486, 1e-05
    %v1489 = vadd.f32 %v1487, 1e-05
    %v1490 = vrsqrt.pop %v1488
    %v1491 = vrsqrt.pop %v1489
    %v1492 = vmul.f32 %v1476, %v1490
    %v1493 = vmul.f32 %v1477, %v1491
    %v1494 = vmul.f32 %v1492, %v73
    %v1495 = vmul.f32 %v1493, %v73
    %v1496 = vpack.c.bf16 %v1495, %v1494
    %v1497 = vld [vmem:[%s7] sm:$0xf]
    %v1498 = vld [vmem:[%s7 + $0x4] sm:$0xf]
    %v1499 = vld [vmem:[%s7 + $0x8] sm:$0xf]
    %v1500 = vld [vmem:[%s7 + $0xc] sm:$0xf]
    %v1505 = vunpack.c.l.b16 %v1497
    %v1506 = vunpack.c.l.b16 %v1498
    %v1507 = vunpack.c.l.b16 %v1499
    %v1508 = vunpack.c.l.b16 %v1500
    %v1509 = vpack.c.b16 %v1506, %v1505
    %v1510 = vpack.c.b16 %v1508, %v1507
    %v1514 = vsel %vm41, %v1496, 0
    %1516 = vmatprep.subr.bf16.mxu0 0
    %1517 = vmatpush1.bf16.msra.mxu0 %v1509
    %1518 = vmatprep.subr.bf16.mxu0 0
    %1519 = vmatpush1.bf16.msra.mxu0 %v1510
    %1520 = vmatprep.subr.bf16.mxu0 0
    %1521 = vmatpush1.bf16.msra.mxu0 0
    %1522 = vmatprep.subr.bf16.mxu0 0
    %1523 = vmatpush1.bf16.msra.mxu0 0
    %1524 = vmatprep.subr.bf16.mxu0 0
    %1525 = vmatpush1.bf16.msra.mxu0 0
    %1526 = vmatprep.subr.bf16.mxu0 0
    %1527 = vmatpush1.bf16.msra.mxu0 0
    %1528 = vmatprep.subr.bf16.mxu0 0
    %1529 = vmatpush1.bf16.msra.mxu0 0
    %1530 = vmatprep.subr.bf16.mxu0 0
    %1531 = vmatpush1.bf16.msra.mxu0 0
    %1532 = vmatprep.subr.bf16.mxu0 0
    %1533 = vmatpush1.bf16.msra.mxu0 0
    %1534 = vmatprep.subr.bf16.mxu0 0
    %1535 = vmatpush1.bf16.msra.mxu0 0
    %1536 = vmatprep.subr.bf16.mxu0 0
    %1537 = vmatpush1.bf16.msra.mxu0 0
    %1538 = vmatprep.subr.bf16.mxu0 0
    %1539 = vmatpush1.bf16.msra.mxu0 0
    %1540 = vmatprep.subr.bf16.mxu0 0
    %1541 = vmatpush1.bf16.msra.mxu0 0
    %1542 = vmatprep.subr.bf16.mxu0 0
    %1543 = vmatpush1.bf16.msra.mxu0 0
    %1544 = vmatprep.subr.bf16.mxu0 0
    %1545 = vmatpush1.bf16.msra.mxu0 0
    %1546 = vmatprep.subr.bf16.mxu0 0
    %1547 = vmatpush1.bf16.msra.mxu0 0
    %1548 = vmatprep.mubr.bf16.mxu0 0
    %1549 = vmatmul.mubr.bf16.gmra.mrb[0].mxu0 %v1514
    %v1550 = vpop.f32.mrb[0].mxu0
    %v1551 = vadd.f32 0.0, %v1550
    %v1552 = vpop.f32.mrb[0].mxu0
    %v1553 = vpop.f32.mrb[0].mxu0
    %v1554 = vadd.f32 0.0, %v1553
    %v1555 = vpop.f32.mrb[0].mxu0
    %1556 = vdwg.mxu0
    %v1557 = vmul.f32 %v1551, 0.5
    %v1558 = vmul.f32 %v1554, 0.5
    %v1559 = vmul.f32 %v1551, %v1551
    %v1560 = vmul.f32 %v1554, %v1554
    %v1561 = vmul.f32 %v1551, %v1559
    %v1562 = vmul.f32 %v1554, %v1560
    %v1563 = vmul.f32 %v1561, 0.044715
    %v1564 = vmul.f32 %v1562, 0.044715
    %v1565 = vadd.f32 %v1551, %v1563
    %v1566 = vadd.f32 %v1554, %v1564
    %v1567 = vmul.f32 %v1565, 0.7978846
    %v1568 = vmul.f32 %v1566, 0.7978846
    %v1569 = vtanh.pop %v1567
    %v1570 = vtanh.pop %v1568
    %v1571 = vadd.f32 %v1569, 1.0
    %v1572 = vadd.f32 %v1570, 1.0
    %v1573 = vmul.f32 %v1557, %v1571
    %v1574 = vmul.f32 %v1558, %v1572
    %v1575 = vpack.c.bf16 %v1574, %v1573
    %v1576 = vld [vmem:[%s8] sm:$0xf]
    %v1577 = vld [vmem:[%s8 + $0x4] sm:$0xf]
    %v1578 = vld [vmem:[%s8 + $0x8] sm:$0xf]
    %v1579 = vld [vmem:[%s8 + $0xc] sm:$0xf]
    %v1580 = vld [vmem:[%s8 + $0x10] sm:$0xf]
    %v1581 = vld [vmem:[%s8 + $0x14] sm:$0xf]
    %v1582 = vld [vmem:[%s8 + $0x18] sm:$0xf]
    %v1583 = vld [vmem:[%s8 + $0x1c] sm:$0xf]
    %v1584 = vld [vmem:[%s8 + $0x20] sm:$0xf]
    %v1585 = vld [vmem:[%s8 + $0x24] sm:$0xf]
    %v1586 = vld [vmem:[%s8 + $0x28] sm:$0xf]
    %v1587 = vld [vmem:[%s8 + $0x2c] sm:$0xf]
    %v1588 = vld [vmem:[%s8 + $0x30] sm:$0xf]
    %v1589 = vld [vmem:[%s8 + $0x34] sm:$0xf]
    %v1590 = vld [vmem:[%s8 + $0x38] sm:$0xf]
    %v1591 = vld [vmem:[%s8 + $0x3c] sm:$0xf]
    %v1608 = vunpack.c.l.b16 %v1576
    %v1609 = vunpack.c.l.b16 %v1577
    %v1610 = vunpack.c.l.b16 %v1578
    %v1611 = vunpack.c.l.b16 %v1579
    %v1612 = vunpack.c.l.b16 %v1580
    %v1613 = vunpack.c.l.b16 %v1581
    %v1614 = vunpack.c.l.b16 %v1582
    %v1615 = vunpack.c.l.b16 %v1583
    %v1616 = vunpack.c.l.b16 %v1584
    %v1617 = vunpack.c.l.b16 %v1585
    %v1618 = vunpack.c.l.b16 %v1586
    %v1619 = vunpack.c.l.b16 %v1587
    %v1620 = vunpack.c.l.b16 %v1588
    %v1621 = vunpack.c.l.b16 %v1589
    %v1622 = vunpack.c.l.b16 %v1590
    %v1623 = vunpack.c.l.b16 %v1591
    %v1624 = vpack.c.b16 %v1609, %v1608
    %v1625 = vpack.c.b16 %v1611, %v1610
    %v1626 = vpack.c.b16 %v1613, %v1612
    %v1627 = vpack.c.b16 %v1615, %v1614
    %v1628 = vpack.c.b16 %v1617, %v1616
    %v1629 = vpack.c.b16 %v1619, %v1618
    %v1630 = vpack.c.b16 %v1621, %v1620
    %v1631 = vpack.c.b16 %v1623, %v1622
    %1640 = vmatprep.subr.bf16.mxu0 0
    %1641 = vmatpush1.bf16.msra.mxu0 %v1624
    %1642 = vmatprep.subr.bf16.mxu0 0
    %1643 = vmatpush1.bf16.msra.mxu0 %v1625
    %1644 = vmatprep.subr.bf16.mxu0 0
    %1645 = vmatpush1.bf16.msra.mxu0 %v1626
    %1646 = vmatprep.subr.bf16.mxu0 0
    %1647 = vmatpush1.bf16.msra.mxu0 %v1627
    %1648 = vmatprep.subr.bf16.mxu0 0
    %1649 = vmatpush1.bf16.msra.mxu0 %v1628
    %1650 = vmatprep.subr.bf16.mxu0 0
    %1651 = vmatpush1.bf16.msra.mxu0 %v1629
    %1652 = vmatprep.subr.bf16.mxu0 0
    %1653 = vmatpush1.bf16.msra.mxu0 %v1630
    %1654 = vmatprep.subr.bf16.mxu0 0
    %1655 = vmatpush1.bf16.msra.mxu0 %v1631
    %1656 = vmatprep.subr.bf16.mxu0 0
    %1657 = vmatpush1.bf16.msra.mxu0 0
    %1658 = vmatprep.subr.bf16.mxu0 0
    %1659 = vmatpush1.bf16.msra.mxu0 0
    %1660 = vmatprep.subr.bf16.mxu0 0
    %1661 = vmatpush1.bf16.msra.mxu0 0
    %1662 = vmatprep.subr.bf16.mxu0 0
    %1663 = vmatpush1.bf16.msra.mxu0 0
    %1664 = vmatprep.subr.bf16.mxu0 0
    %1665 = vmatpush1.bf16.msra.mxu0 0
    %1666 = vmatprep.subr.bf16.mxu0 0
    %1667 = vmatpush1.bf16.msra.mxu0 0
    %1668 = vmatprep.subr.bf16.mxu0 0
    %1669 = vmatpush1.bf16.msra.mxu0 0
    %1670 = vmatprep.subr.bf16.mxu0 0
    %1671 = vmatpush1.bf16.msra.mxu0 0
    %1672 = vmatprep.mubr.bf16.mxu0 0
    %1673 = vmatmul.mubr.bf16.gmra.mrb[0].mxu0 %v1575
    %v1674 = vpop.f32.mrb[0].mxu0
    %v1675 = vadd.f32 0.0, %v1674
    %v1676 = vpop.f32.mrb[0].mxu0
    %v1677 = vpop.f32.mrb[0].mxu0
    %v1678 = vadd.f32 0.0, %v1677
    %v1679 = vpop.f32.mrb[0].mxu0
    %1680 = vdwg.mxu0
    %v1681 = vadd.f32 %v1466, %v1675
    %v1682 = vadd.f32 %v1467, %v1678
    %v1683 = vpack.c.bf16 %v1682, %v1681
    %v1685 = vunpack.c.l.b16 %v1683
    %v1686 = vunpack.c.h.b16 %v1683
    %v1687 = vpack.c.b16 %v1685, %v1685
    %v1688 = vpack.c.b16 %v1686, %v1686
    %vm1691 = vcmask 257024
    %1692 = vst.msk [vmem:[#allocation2] sm:$0xf] %vm1691, %v1687
    %1693 = vst.msk [vmem:[#allocation2 + $0x4] sm:$0xf] %vm1691, %v1688
    // Predicated region
    $region38: #{tpu_custom_call.1} parent=1 // pred_check
      _
    $region39: #{tpu_custom_call.1} parent=1 // pred_check_branch
      %1695 = sbr.rel (0) target = $region41
    $region40: #{tpu_custom_call.1} parent=1 // pred_region
      %s1697 = ssub.s32 128, 128
      %1698 = vsyncadd [#allocation3], %s1697
      %s1699 = sshll.u32 [#allocation2], 4
      %s1700 = int_to_ptr.vmem [resolvable:$true] %s1699
      %1705 = dma.vmem_to_hbm [thread:$0]  %s1700, 128, %s9, [#allocation3], 64, 64, 4
    $region41: #{tpu_custom_call.1} parent=1 // pred_fallthru
      _
    // Predicated region
    $region42: #{tpu_custom_call.1} parent=1 // pred_check
      _
    $region43: #{tpu_custom_call.1} parent=1 // pred_check_branch
      %1707 = sbr.rel (0) target = $region45
    $region44: #{tpu_custom_call.1} parent=1 // pred_region
      %1708 = dma.done [#allocation3], 128
    $region45: #{tpu_custom_call.1} parent=1 // pred_fallthru
      _
    %1709 = vsyncpa [#allocation3], 1

</llo_original>
